<compile_context>
chip_gen: v7x
topology: tpu7x:2x2x1
jax: 0.10.0
libtpu: 0.0.40
codegen_flags: <defaults>
</compile_context>

<pallas_src>
import functools

import jax
import jax.numpy as jnp
from jax.experimental import pallas as pl
from jax.experimental.pallas import tpu as pltpu


def _pick_vmem_limit_bytes():
    """Generation-aware scoped-VMEM budget: ~3/4 of physical VMEM
    (~48 MiB on v7x, ~96 MiB on v5e/v6e), with a safe fallback."""
    try:
        cap = int(pltpu.get_tpu_info().vmem_capacity_bytes)
    except Exception:
        cap = 64 * 1024 * 1024
    return min(100 * 1024 * 1024, (cap * 3) // 4)


_VMEM_LIMIT_BYTES = _pick_vmem_limit_bytes()


# --------------------------------------------------------------------------- #
# Kernel 1: attention context, streamed flash-style over S tiles.
# --------------------------------------------------------------------------- #
def attention_kernel(s_ref, ctx_ref, mask_ref, out_ref, m_sc, d_sc, acc_sc):
    """One grid step == one S-tile.  Online softmax so the full (B, S, H)
    context never has to be VMEM-resident."""
    si = pl.program_id(0)
    f32 = jnp.float32

    @pl.when(si == 0)
    def _():
        m_sc[...] = jnp.full_like(m_sc, -jnp.inf)
        d_sc[...] = jnp.zeros_like(d_sc)
        acc_sc[...] = jnp.zeros_like(acc_sc)

    ctx = ctx_ref[...]                                  # (B, tS, H) bf16
    q = s_ref[...].astype(ctx.dtype)                    # (B, H) — mirror MXU precision policy
    # Scores for this tile; softmax math is kept on squeezed (B, tS) tensors.
    # NOTE: q has a single row per batch so the MXU matvec is row-underutilized;
    # at production S a VPU-mul + XLU-reduce formulation of the scores can be used.
    scores = jnp.einsum("bqh,bsh->bqs", q[:, None, :], ctx,
                        preferred_element_type=f32)[:, 0, :]        # (B, tS)

    m_prev = m_sc[...]                                               # (B, 1)
    m_new = jnp.maximum(m_prev, jnp.max(scores, axis=-1, keepdims=True))
    alpha = jnp.exp(m_prev - m_new)
    e = jnp.exp(scores - m_new)                                      # (B, tS)
    d_sc[...] = alpha * d_sc[...] + jnp.sum(e, axis=-1, keepdims=True)
    # Mask multiplies the (unnormalized) attention weights and is NOT
    # renormalized: identical to torch's `softmax(scores) * mask`.
    em = (e * mask_ref[...]).astype(ctx.dtype)                       # bf16 MXU operand
    acc_sc[...] = alpha * acc_sc[...] + jnp.einsum(
        "bqs,bsh->bqh", em[:, None, :], ctx,
        preferred_element_type=f32)[:, 0, :]                         # (B, H)
    m_sc[...] = m_new

    @pl.when(si == pl.num_programs(0) - 1)
    def _():
        # Single normalization at the end; approx reciprocal runs on the EUP.
        out_ref[...] = acc_sc[...] * pl.reciprocal(d_sc[...], approx=True)


# --------------------------------------------------------------------------- #
# Kernel 2: GRU stack, one grid step per layer, per-layer weight streaming.
# --------------------------------------------------------------------------- #
def make_gru_stack_kernel(hidden: int):
    H = hidden

    def kernel(x0_ref, h_in_ref, w_ih0_ref, w_ih_ref, w_hh_ref, b_i_ref,
               b_hn_ref, out_ref, new_state_ref, h_carry, gi_sc):
        l = pl.program_id(0)
        f32 = jnp.float32
        wdt = w_hh_ref.dtype                  # bf16 MXU operands, f32 accumulation

        # --- fused input-to-hidden gates: ONE (B, K) @ (K, 3H) MXU call ---
        # Layer 0 consumes x0 = [seq_emb, att_context] (K = 2H, resident weights).
        # Layers > 0 consume the previous layer's hidden state carried in VMEM
        # (K = H, weights streamed per layer -> no padded / zero-row DMA).
        @pl.when(l == 0)
        def _():
            gi_sc[...] = jnp.dot(x0_ref[...], w_ih0_ref[...],
                                 preferred_element_type=f32)

        @pl.when(l > 0)
        def _():
            gi_sc[...] = jnp.dot(h_carry[...].astype(wdt), w_ih_ref[...],
                                 preferred_element_type=f32)

        h = h_in_ref[...]                                  # (B, H) f32, this layer's state
        gi = gi_sc[...] + b_i_ref[...]                     # (B, 3H); columns [r | z | n]
        # --- fused hidden-to-hidden gates: ONE (B, H) @ (H, 3H) MXU call ---
        gh = jnp.dot(h.astype(wdt), w_hh_ref[...], preferred_element_type=f32)

        # 128-lane-aligned gate slices (H is a multiple of 128).
        r = jax.nn.sigmoid(gi[:, 0:H] + gh[:, 0:H])
        z = jax.nn.sigmoid(gi[:, H:2 * H] + gh[:, H:2 * H])
        n = jnp.tanh(gi[:, 2 * H:] + r * (gh[:, 2 * H:] + b_hn_ref[...]))
        h_new = (1.0 - z) * n + z * h

        new_state_ref[...] = h_new            # per-layer output block (pipelined writeback)
        h_carry[...] = h_new                  # next layer's input

        @pl.when(l == pl.num_programs(0) - 1)
        def _():
            out_ref[...] = h_new              # top-layer output (constant block index)

    return kernel


# --------------------------------------------------------------------------- #
# Parameter packing / wrapper / references.
# --------------------------------------------------------------------------- #
def pack_params(params, *, num_layers, hidden, weight_dtype=jnp.bfloat16):
    """One-time conversion of PyTorch-layout f32 params into the kernel layout:
    weights pre-transposed with gates stacked along the OUTPUT dim (-> one fused
    (B,K)@(K,3H) dot per matmul), r/z biases pre-merged (b_ih+b_hh), b_hn kept
    separate (it lives inside the r*(...) term), and layer-0's W_ih kept at its
    true K = 2H while layers >= 1 stream an un-padded (H, 3H) block."""
    H = hidden
    w_ih_rest, w_hh, b_i, b_hn = [], [], [], []
    w_ih0 = None
    for l in range(num_layers):
        wi = params[f"w_ih{l}"].T                       # (in_size, 3H), columns [r|z|n]
        wh = params[f"w_hh{l}"].T                       # (H, 3H)
        bi = params[f"b_ih{l}"]
        bh = params[f"b_hh{l}"]
        b_merged = jnp.concatenate(
            [bi[0:H] + bh[0:H], bi[H:2 * H] + bh[H:2 * H], bi[2 * H:]])
        if l == 0:
            w_ih0 = wi                                  # (2H, 3H)
        else:
            w_ih_rest.append(wi)                        # (H, 3H)
        w_hh.append(wh)
        b_i.append(b_merged[None, :])                   # (1, 3H)
        b_hn.append(bh[2 * H:][None, :])                # (1, H)
    if w_ih_rest:
        w_ih_rest = jnp.stack(w_ih_rest)
    else:                                               # single-layer stack: dummy, never read
        w_ih_rest = jnp.zeros((1, H, 3 * H), jnp.float32)
    return {
        "emb": params["emb"],                           # row-gathered outside the kernel
        "w_ih0": w_ih0.astype(weight_dtype),            # (2H, 3H)     layer-0, resident
        "w_ih_rest": w_ih_rest.astype(weight_dtype),    # (L-1, H, 3H) streamed (index l-1)
        "w_hh": jnp.stack(w_hh).astype(weight_dtype),   # (L, H, 3H)   streamed
        "b_i": jnp.stack(b_i).astype(jnp.float32),      # (L, 1, 3H)   streamed
        "b_hn": jnp.stack(b_hn).astype(jnp.float32),    # (L, 1, H)    streamed
    }


def decoder_forward(seq, context, state, mask, packed, *, hidden, s_tile=None):
    """Mirrors Decoder.forward: returns (output (B,1,H), new_state (L,B,H))."""
    H = hidden
    B, S, _ = context.shape
    L = packed["w_hh"].shape[0]
    wdt = packed["w_hh"].dtype

    # ---- tiny XLA glue hoisted out of the kernels (per the perf review) ----
    seq_emb = jnp.take(packed["emb"], seq, axis=0).astype(jnp.float32)   # (B,H) row gather
    s_mean = jnp.mean(state.astype(jnp.float32), axis=0)                 # (B,H)
    ctx = context.astype(wdt)                  # bf16 halves the streamed context bytes
    maskf = mask.astype(jnp.float32)
    state_f = state.astype(jnp.float32)

    # ---- kernel 1: attention context streamed over S tiles ----
    ts = s_tile if s_tile is not None else min(S, 512)
    assert S % ts == 0, "S must be a multiple of the S tile"
    att_ctx = pl.pallas_call(
        attention_kernel,
        out_shape=jax.ShapeDtypeStruct((B, H), jnp.float32),
        grid_spec=pltpu.PrefetchScalarGridSpec(
            num_scalar_prefetch=0,
            grid=(S // ts,),
            in_specs=[
                pl.BlockSpec((B, H), lambda si: (0, 0)),           # s_mean  (resident)
                pl.BlockSpec((B, ts, H), lambda si: (0, si, 0)),   # context (streamed)
                pl.BlockSpec((B, ts), lambda si: (0, si)),         # mask    (streamed)
            ],
            out_specs=pl.BlockSpec((B, H), lambda si: (0, 0)),
            scratch_shapes=[pltpu.VMEM((B, 1), jnp.float32),       # running max
                            pltpu.VMEM((B, 1), jnp.float32),       # running denom
                            pltpu.VMEM((B, H), jnp.float32)],      # running numerator
        ),
        compiler_params=pltpu.CompilerParams(
            dimension_semantics=("arbitrary",),
            vmem_limit_bytes=_VMEM_LIMIT_BYTES),
    )(s_mean, ctx, maskf)

    # Layer-0 GRU input (trivial concat + cast; kept out of the hot kernel).
    x0 = jnp.concatenate([seq_emb, att_ctx], axis=-1).astype(wdt)        # (B, 2H)

    # ---- kernel 2: GRU stack over layers, per-layer weight streaming ----
    grid_spec = pltpu.PrefetchScalarGridSpec(
        num_scalar_prefetch=0,
        grid=(L,),
        in_specs=[
            pl.BlockSpec((B, 2 * H), lambda l: (0, 0)),                    # x0        (resident)
            pl.BlockSpec((None, B, H), lambda l: (l, 0, 0)),               # h_in      (streamed)
            pl.BlockSpec((2 * H, 3 * H), lambda l: (0, 0)),                # W_ih l==0 (resident)
            pl.BlockSpec((None, H, 3 * H),                                 # W_ih l>=1 (streamed,
                         lambda l: (jnp.maximum(l - 1, 0), 0, 0)),         #  un-padded K = H)
            pl.BlockSpec((None, H, 3 * H), lambda l: (l, 0, 0)),           # W_hh      (streamed)
            pl.BlockSpec((None, 1, 3 * H), lambda l: (l, 0, 0)),           # merged r/z/n bias
            pl.BlockSpec((None, 1, H), lambda l: (l, 0, 0)),               # b_hn
        ],
        out_specs=(
            pl.BlockSpec((B, H), lambda l: (0, 0)),                        # top-layer output
            pl.BlockSpec((None, B, H), lambda l: (l, 0, 0)),               # new_state per layer
        ),
        scratch_shapes=[
            pltpu.VMEM((B, H), jnp.float32),        # hidden-state carry (next layer's input)
            pltpu.VMEM((B, 3 * H), jnp.float32),    # fused input-to-hidden gate preactivations
        ],
    )
    out, new_state = pl.pallas_call(
        make_gru_stack_kernel(H),
        grid_spec=grid_spec,
        out_shape=(
            jax.ShapeDtypeStruct((B, H), jnp.float32),
            jax.ShapeDtypeStruct((L, B, H), jnp.float32),
        ),
        compiler_params=pltpu.CompilerParams(
            dimension_semantics=("arbitrary",),     # layer axis is a sequential carry
            vmem_limit_bytes=_VMEM_LIMIT_BYTES),
    )(x0, state_f, packed["w_ih0"], packed["w_ih_rest"], packed["w_hh"],
      packed["b_i"], packed["b_hn"])
    return out[:, None, :], new_state


def init_params(key, vocab, hidden, num_layers, padding_idx):
    """PyTorch-layout f32 master parameters."""
    keys = jax.random.split(key, 1 + 4 * num_layers)
    emb = 0.1 * jax.random.normal(keys[0], (vocab, hidden), jnp.float32)
    emb = emb.at[padding_idx].set(0.0)      # nn.Embedding zeroes the padding row
    params = {"emb": emb}
    bound = 1.0 / (hidden ** 0.5)
    for l in range(num_layers):
        in_size = 2 * hidden if l == 0 else hidden
        k = keys[1 + 4 * l: 1 + 4 * (l + 1)]
        params[f"w_ih{l}"] = jax.random.uniform(k[0], (3 * hidden, in_size), jnp.float32, -bound, bound)
        params[f"w_hh{l}"] = jax.random.uniform(k[1], (3 * hidden, hidden), jnp.float32, -bound, bound)
        params[f"b_ih{l}"] = jax.random.uniform(k[2], (3 * hidden,), jnp.float32, -bound, bound)
        params[f"b_hh{l}"] = jax.random.uniform(k[3], (3 * hidden,), jnp.float32, -bound, bound)
    return params


def reference_forward(seq, context, state, mask, params, *, num_layers, hidden,
                      matmul_dtype=None, kernel_order=False):
    """Pure-JAX reference.
      matmul_dtype=None                -> exact f32 PyTorch semantics.
      matmul_dtype=bf16, kernel_order  -> mirrors the kernel's mixed-precision
      policy and its streaming-softmax ordering (mask/cast the unnormalized
      weights, contract, normalize afterwards in f32)."""
    H = hidden
    f32 = jnp.float32
    cast = (lambda a: a.astype(matmul_dtype)) if matmul_dtype is not None else (lambda a: a)

    seq_emb = params["emb"][seq]                                     # (B, H)
    s = state.mean(axis=0)                                           # (B, H)
    scores = jnp.einsum("bh,bsh->bs", cast(s), cast(context),
                        preferred_element_type=f32)
    if kernel_order:
        e = jnp.exp(scores - scores.max(axis=-1, keepdims=True))
        num = jnp.einsum("bs,bsh->bh", cast(e * mask), cast(context),
                         preferred_element_type=f32)
        att_ctx = num / jnp.sum(e, axis=-1, keepdims=True)
    else:
        att = jax.nn.softmax(scores, axis=-1) * mask                 # masked, NOT renormalized
        att_ctx = jnp.einsum("bs,bsh->bh", cast(att), cast(context),
                             preferred_element_type=f32)
    x = jnp.concatenate([seq_emb, att_ctx], axis=-1)
    new_state = []
    for l in range(num_layers):
        w_ih, w_hh = params[f"w_ih{l}"], params[f"w_hh{l}"]
        b_ih, b_hh = params[f"b_ih{l}"], params[f"b_hh{l}"]
        h = state[l]
        gi = jnp.dot(cast(x), cast(w_ih.T), preferred_element_type=f32) + b_ih
        gh = jnp.dot(cast(h), cast(w_hh.T), preferred_element_type=f32) + b_hh
        r = jax.nn.sigmoid(gi[:, :H] + gh[:, :H])
        z = jax.nn.sigmoid(gi[:, H:2 * H] + gh[:, H:2 * H])
        n = jnp.tanh(gi[:, 2 * H:] + r * gh[:, 2 * H:])
        h = (1.0 - z) * n + z * h
        new_state.append(h)
        x = h
    return x[:, None, :], jnp.stack(new_state)


if __name__ == "__main__":
    # Small but (8,128)-aligned shapes: B multiple of 8 (sublane), S/H multiples
    # of 128 (lane) -> lane-dense unmasked stores, lane-aligned gate slabs.
    B, S, H = 8, 128, 128
    L, VOCAB, PAD = 2, 64, 0

    key = jax.random.PRNGKey(0)
    k_par, k_seq, k_ctx, k_state, k_mask = jax.random.split(key, 5)

    params = init_params(k_par, VOCAB, H, L, PAD)                       # f32 masters (PyTorch layout)
    packed = pack_params(params, num_layers=L, hidden=H,                # one-time pack: transpose/fuse/merge, bf16
                         weight_dtype=jnp.bfloat16)

    seq = jax.random.randint(k_seq, (B,), 1, VOCAB, dtype=jnp.int32)
    context = jax.random.normal(k_ctx, (B, S, H), jnp.float32)
    state = jax.random.normal(k_state, (L, B, H), jnp.float32)
    mask = (jax.random.uniform(k_mask, (B, S)) > 0.25).astype(jnp.float32)

    fwd = jax.jit(functools.partial(decoder_forward, hidden=H))
    out, new_state = fwd(seq, context, state, mask, packed)
    jax.block_until_ready((out, new_state))

    # Tight check: same mixed-precision math / ordering in pure JAX.
    ref_out_t, ref_state_t = reference_forward(
        seq, context, state, mask, params, num_layers=L, hidden=H,
        matmul_dtype=jnp.bfloat16, kernel_order=True)
    # Loose check: exact f32 PyTorch semantics (difference = bf16 rounding only).
    ref_out_f, ref_state_f = reference_forward(
        seq, context, state, mask, params, num_layers=L, hidden=H)

    assert out.shape == (B, 1, H) and new_state.shape == (L, B, H)
    assert jnp.allclose(out, ref_out_t, atol=1e-2, rtol=1e-2)
    assert jnp.allclose(new_state, ref_state_t, atol=1e-2, rtol=1e-2)
    assert jnp.allclose(out, ref_out_f, atol=1e-1, rtol=1e-1)
    assert jnp.allclose(new_state, ref_state_f, atol=1e-1, rtol=1e-1)
    print("KERNEL_OK")
</pallas_src>

<mosaic_0001>
module attributes {stable_mosaic.version = 11 : i64} {
  func.func @attention_kernel(%arg0: i32, %arg1: memref<8x128xf32, #tpu.memory_space<vmem>>, %arg2: memref<8x128x128xbf16, #tpu.memory_space<vmem>>, %arg3: memref<8x128xf32, #tpu.memory_space<vmem>>, %arg4: memref<8x128xf32, #tpu.memory_space<vmem>>, %arg5: memref<8x1xf32, #tpu.memory_space<vmem>>, %arg6: memref<8x1xf32, #tpu.memory_space<vmem>>, %arg7: memref<8x128xf32, #tpu.memory_space<vmem>>) attributes {dimension_semantics = [#tpu.dimension_semantics<arbitrary>], iteration_bounds = array<i64: 1>, scalar_prefetch = 0 : i64, scratch_operands = 3 : i64, tpu.core_type = #tpu.core_type<tc>, window_params = [{pipeline_mode = #tpu.pipeline_mode<synchronous>, transform_indices = @transform_0, window_bounds = array<i64: 8, 128>}, {transform_indices = @transform_1, window_bounds = array<i64: 8, 128, 128>}, {transform_indices = @transform_2, window_bounds = array<i64: 8, 128>}, {pipeline_mode = #tpu.pipeline_mode<synchronous>, transform_indices = @transform_3, window_bounds = array<i64: 8, 128>}]} {
    %c0_i32 = arith.constant 0 : i32
    %0 = arith.cmpi eq, %arg0, %c0_i32 : i32
    %1 = arith.extui %0 : i1 to i32
    %c0_i32_0 = arith.constant 0 : i32
    %2 = arith.cmpi ne, %1, %c0_i32_0 : i32
    scf.if %2 {
      %cst_24 = arith.constant 0xFF800000 : f32
      %39 = vector.broadcast %cst_24 : f32 to vector<8x1xf32>
      %c0_25 = arith.constant 0 : index
      %c0_26 = arith.constant 0 : index
      %40 = vector.load %arg5[%c0_25, %c0_26] : memref<8x1xf32, #tpu.memory_space<vmem>>, vector<8x1xf32>
      tpu.vector_store %arg5[%c0_25, %c0_26], %39 {strides = array<i32>} : memref<8x1xf32, #tpu.memory_space<vmem>>, vector<8x1xf32>,
      %cst_27 = arith.constant 0.000000e+00 : f32
      %41 = vector.broadcast %cst_27 : f32 to vector<8x1xf32>
      %c0_28 = arith.constant 0 : index
      %c0_29 = arith.constant 0 : index
      %42 = vector.load %arg6[%c0_28, %c0_29] : memref<8x1xf32, #tpu.memory_space<vmem>>, vector<8x1xf32>
      tpu.vector_store %arg6[%c0_28, %c0_29], %41 {strides = array<i32>} : memref<8x1xf32, #tpu.memory_space<vmem>>, vector<8x1xf32>,
      %cst_30 = arith.constant 0.000000e+00 : f32
      %43 = vector.broadcast %cst_30 : f32 to vector<8x128xf32>
      %c0_31 = arith.constant 0 : index
      %c0_32 = arith.constant 0 : index
      %44 = vector.load %arg7[%c0_31, %c0_32] : memref<8x128xf32, #tpu.memory_space<vmem>>, vector<8x128xf32>
      tpu.vector_store %arg7[%c0_31, %c0_32], %43 {strides = array<i32>} : memref<8x128xf32, #tpu.memory_space<vmem>>, vector<8x128xf32>,
    } else {
    }
    %c0 = arith.constant 0 : index
    %c0_1 = arith.constant 0 : index
    %c0_2 = arith.constant 0 : index
    %3 = vector.load %arg2[%c0, %c0_1, %c0_2] : memref<8x128x128xbf16, #tpu.memory_space<vmem>>, vector<8x128x128xbf16>
    %c0_3 = arith.constant 0 : index
    %c0_4 = arith.constant 0 : index
    %4 = vector.load %arg1[%c0_3, %c0_4] : memref<8x128xf32, #tpu.memory_space<vmem>>, vector<8x128xf32>
    %5 = arith.truncf %4 : vector<8x128xf32> to vector<8x128xbf16>
    %6 = vector.shape_cast %5 : vector<8x128xbf16> to vector<8x1x128xbf16>
    "tpu.trace_start"() <{level = 10 : i32, message = "bqh,bsh->bqs"}> : () -> ()
    %cst = arith.constant dense<0.000000e+00> : vector<8x1x128xf32>
    %7 = tpu.matmul %6, %3, %cst {dimension_numbers = #tpu.dot_dimension_numbers<[2], [2], [1], [1], [0, 0, 0, 1, 1, 1], [0], [0]>} : vector<8x1x128xbf16>, vector<8x128x128xbf16>, vector<8x1x128xf32> -> vector<8x1x128xf32>
    "tpu.trace_stop"() : () -> ()
    %8 = vector.shape_cast %7 : vector<8x1x128xf32> to vector<8x128xf32>
    %c0_5 = arith.constant 0 : index
    %c0_6 = arith.constant 0 : index
    %9 = vector.load %arg5[%c0_5, %c0_6] : memref<8x1xf32, #tpu.memory_space<vmem>>, vector<8x1xf32>
    %cst_7 = arith.constant dense<0xFF800000> : vector<8xf32>
    %10 = vector.multi_reduction <maximumf>, %8, %cst_7 [1] : vector<8x128xf32> to vector<8xf32>
    %11 = vector.shape_cast %10 : vector<8xf32> to vector<8x1xf32>
    %12 = arith.maximumf %9, %11 : vector<8x1xf32>
    %13 = arith.subf %9, %12 : vector<8x1xf32>
    %14 = math.exp %13 : vector<8x1xf32>
    %15 = vector.broadcast %12 : vector<8x1xf32> to vector<8x128xf32>
    %16 = arith.subf %8, %15 : vector<8x128xf32>
    %17 = math.exp %16 : vector<8x128xf32>
    %c0_8 = arith.constant 0 : index
    %c0_9 = arith.constant 0 : index
    %18 = vector.load %arg6[%c0_8, %c0_9] : memref<8x1xf32, #tpu.memory_space<vmem>>, vector<8x1xf32>
    %19 = arith.mulf %14, %18 : vector<8x1xf32>
    %cst_10 = arith.constant dense<0.000000e+00> : vector<8xf32>
    %20 = vector.multi_reduction <add>, %17, %cst_10 [1] : vector<8x128xf32> to vector<8xf32>
    %21 = vector.shape_cast %20 : vector<8xf32> to vector<8x1xf32>
    %22 = arith.addf %19, %21 : vector<8x1xf32>
    %c0_11 = arith.constant 0 : index
    %c0_12 = arith.constant 0 : index
    %23 = vector.load %arg6[%c0_11, %c0_12] : memref<8x1xf32, #tpu.memory_space<vmem>>, vector<8x1xf32>
    tpu.vector_store %arg6[%c0_11, %c0_12], %22 {strides = array<i32>} : memref<8x1xf32, #tpu.memory_space<vmem>>, vector<8x1xf32>,
    %c0_13 = arith.constant 0 : index
    %c0_14 = arith.constant 0 : index
    %24 = vector.load %arg3[%c0_13, %c0_14] : memref<8x128xf32, #tpu.memory_space<vmem>>, vector<8x128xf32>
    %25 = arith.mulf %17, %24 : vector<8x128xf32>
    %26 = arith.truncf %25 : vector<8x128xf32> to vector<8x128xbf16>
    %c0_15 = arith.constant 0 : index
    %c0_16 = arith.constant 0 : index
    %27 = vector.load %arg7[%c0_15, %c0_16] : memref<8x128xf32, #tpu.memory_space<vmem>>, vector<8x128xf32>
    %28 = vector.broadcast %14 : vector<8x1xf32> to vector<8x128xf32>
    %29 = arith.mulf %28, %27 : vector<8x128xf32>
    %30 = vector.shape_cast %26 : vector<8x128xbf16> to vector<8x1x128xbf16>
    "tpu.trace_start"() <{level = 10 : i32, message = "bqs,bsh->bqh"}> : () -> ()
    %cst_17 = arith.constant dense<0.000000e+00> : vector<8x1x128xf32>
    %31 = tpu.matmul %30, %3, %cst_17 {dimension_numbers = #tpu.dot_dimension_numbers<[2], [1], [1], [2], [0, 0, 0, 1, 1, 2], [0], [0]>} : vector<8x1x128xbf16>, vector<8x128x128xbf16>, vector<8x1x128xf32> -> vector<8x1x128xf32>
    "tpu.trace_stop"() : () -> ()
    %32 = vector.shape_cast %31 : vector<8x1x128xf32> to vector<8x128xf32>
    %33 = arith.addf %29, %32 : vector<8x128xf32>
    %c0_18 = arith.constant 0 : index
    %c0_19 = arith.constant 0 : index
    %34 = vector.load %arg7[%c0_18, %c0_19] : memref<8x128xf32, #tpu.memory_space<vmem>>, vector<8x128xf32>
    tpu.vector_store %arg7[%c0_18, %c0_19], %33 {strides = array<i32>} : memref<8x128xf32, #tpu.memory_space<vmem>>, vector<8x128xf32>,
    %c0_20 = arith.constant 0 : index
    %c0_21 = arith.constant 0 : index
    %35 = vector.load %arg5[%c0_20, %c0_21] : memref<8x1xf32, #tpu.memory_space<vmem>>, vector<8x1xf32>
    tpu.vector_store %arg5[%c0_20, %c0_21], %12 {strides = array<i32>} : memref<8x1xf32, #tpu.memory_space<vmem>>, vector<8x1xf32>,
    %c0_i32_22 = arith.constant 0 : i32
    %36 = arith.cmpi eq, %arg0, %c0_i32_22 : i32
    %37 = arith.extui %36 : i1 to i32
    %c0_i32_23 = arith.constant 0 : i32
    %38 = arith.cmpi ne, %37, %c0_i32_23 : i32
    scf.if %38 {
      %c0_24 = arith.constant 0 : index
      %c0_25 = arith.constant 0 : index
      %39 = vector.load %arg7[%c0_24, %c0_25] : memref<8x128xf32, #tpu.memory_space<vmem>>, vector<8x128xf32>
      %c0_26 = arith.constant 0 : index
      %c0_27 = arith.constant 0 : index
      %40 = vector.load %arg6[%c0_26, %c0_27] : memref<8x1xf32, #tpu.memory_space<vmem>>, vector<8x1xf32>
      %41 = tpu.reciprocal %40 {approx = true} : vector<8x1xf32> -> vector<8x1xf32>
      %42 = vector.broadcast %41 : vector<8x1xf32> to vector<8x128xf32>
      %43 = arith.mulf %39, %42 : vector<8x128xf32>
      %c0_28 = arith.constant 0 : index
      %c0_29 = arith.constant 0 : index
      %44 = vector.load %arg4[%c0_28, %c0_29] : memref<8x128xf32, #tpu.memory_space<vmem>>, vector<8x128xf32>
      tpu.vector_store %arg4[%c0_28, %c0_29], %43 {strides = array<i32>} : memref<8x128xf32, #tpu.memory_space<vmem>>, vector<8x128xf32>,
    } else {
    }
    return
  }
  func.func @transform_0(%arg0: i32) -> (i32, i32) {
    %c0_i32 = arith.constant 0 : i32
    %c0_i32_0 = arith.constant 0 : i32
    %c0_i32_1 = arith.constant 0 : i32
    return %c0_i32, %c0_i32_0 : i32, i32
  }
  func.func @transform_1(%arg0: i32) -> (i32, i32, i32) {
    %c0_i32 = arith.constant 0 : i32
    %c0_i32_0 = arith.constant 0 : i32
    %c0_i32_1 = arith.constant 0 : i32
    return %c0_i32, %arg0, %c0_i32_0 : i32, i32, i32
  }
  func.func @transform_2(%arg0: i32) -> (i32, i32) {
    %c0_i32 = arith.constant 0 : i32
    %c0_i32_0 = arith.constant 0 : i32
    return %c0_i32, %arg0 : i32, i32
  }
  func.func @transform_3(%arg0: i32) -> (i32, i32) {
    %c0_i32 = arith.constant 0 : i32
    %c0_i32_0 = arith.constant 0 : i32
    %c0_i32_1 = arith.constant 0 : i32
    return %c0_i32, %c0_i32_0 : i32, i32
  }
}

module attributes {stable_mosaic.version = 11 : i64} {
  func.func @kernel(%arg0: i32, %arg1: memref<8x256xbf16, #tpu.memory_space<vmem>>, %arg2: memref<1x8x128xf32, #tpu.memory_space<vmem>>, %arg3: memref<256x384xbf16, #tpu.memory_space<vmem>>, %arg4: memref<1x128x384xbf16, #tpu.memory_space<vmem>>, %arg5: memref<1x128x384xbf16, #tpu.memory_space<vmem>>, %arg6: memref<1x1x384xf32, #tpu.memory_space<vmem>>, %arg7: memref<1x1x128xf32, #tpu.memory_space<vmem>>, %arg8: memref<8x128xf32, #tpu.memory_space<vmem>>, %arg9: memref<1x8x128xf32, #tpu.memory_space<vmem>>, %arg10: memref<8x128xf32, #tpu.memory_space<vmem>>, %arg11: memref<8x384xf32, #tpu.memory_space<vmem>>) attributes {dimension_semantics = [#tpu.dimension_semantics<arbitrary>], iteration_bounds = array<i64: 2>, scalar_prefetch = 0 : i64, scratch_operands = 2 : i64, tpu.core_type = #tpu.core_type<tc>, window_params = [{pipeline_mode = #tpu.pipeline_mode<synchronous>, transform_indices = @transform_0, window_bounds = array<i64: 8, 256>}, {transform_indices = @transform_1, window_bounds = array<i64: 1, 8, 128>}, {pipeline_mode = #tpu.pipeline_mode<synchronous>, transform_indices = @transform_2, window_bounds = array<i64: 256, 384>}, {transform_indices = @transform_3, window_bounds = array<i64: 1, 128, 384>}, {transform_indices = @transform_4, window_bounds = array<i64: 1, 128, 384>}, {transform_indices = @transform_5, window_bounds = array<i64: 1, 1, 384>}, {transform_indices = @transform_6, window_bounds = array<i64: 1, 1, 128>}, {pipeline_mode = #tpu.pipeline_mode<synchronous>, transform_indices = @transform_7, window_bounds = array<i64: 8, 128>}, {transform_indices = @transform_8, window_bounds = array<i64: 1, 8, 128>}]} {
    %c0_i32 = arith.constant 0 : i32
    %0 = arith.cmpi eq, %arg0, %c0_i32 : i32
    %1 = arith.extui %0 : i1 to i32
    %c0_i32_0 = arith.constant 0 : i32
    %2 = arith.cmpi ne, %1, %c0_i32_0 : i32
    scf.if %2 {
      %c0_25 = arith.constant 0 : index
      %c0_26 = arith.constant 0 : index
      %54 = vector.load %arg1[%c0_25, %c0_26] : memref<8x256xbf16, #tpu.memory_space<vmem>>, vector<8x256xbf16>
      %c0_27 = arith.constant 0 : index
      %c0_28 = arith.constant 0 : index
      %55 = vector.load %arg3[%c0_27, %c0_28] : memref<256x384xbf16, #tpu.memory_space<vmem>>, vector<256x384xbf16>
      %cst_29 = arith.constant dense<0.000000e+00> : vector<8x384xf32>
      %56 = tpu.matmul %54, %55, %cst_29 {dimension_numbers = #tpu.dot_dimension_numbers<[1], [0], [0], [1], [0, 0, 1, 1], [], []>} : vector<8x256xbf16>, vector<256x384xbf16>, vector<8x384xf32> -> vector<8x384xf32>
      %c0_30 = arith.constant 0 : index
      %c0_31 = arith.constant 0 : index
      %57 = vector.load %arg11[%c0_30, %c0_31] : memref<8x384xf32, #tpu.memory_space<vmem>>, vector<8x384xf32>
      tpu.vector_store %arg11[%c0_30, %c0_31], %56 {strides = array<i32>} : memref<8x384xf32, #tpu.memory_space<vmem>>, vector<8x384xf32>,
    } else {
    }
    %c0_i32_1 = arith.constant 0 : i32
    %3 = arith.cmpi sgt, %arg0, %c0_i32_1 : i32
    %4 = arith.extui %3 : i1 to i32
    %c0_i32_2 = arith.constant 0 : i32
    %5 = arith.cmpi ne, %4, %c0_i32_2 : i32
    scf.if %5 {
      %c0_25 = arith.constant 0 : index
      %c0_26 = arith.constant 0 : index
      %54 = vector.load %arg10[%c0_25, %c0_26] : memref<8x128xf32, #tpu.memory_space<vmem>>, vector<8x128xf32>
      %55 = arith.truncf %54 : vector<8x128xf32> to vector<8x128xbf16>
      %c0_27 = arith.constant 0 : index
      %c0_28 = arith.constant 0 : index
      %c0_29 = arith.constant 0 : index
      %56 = vector.load %arg4[%c0_27, %c0_28, %c0_29] : memref<1x128x384xbf16, #tpu.memory_space<vmem>>, vector<1x128x384xbf16>
      %57 = vector.shape_cast %56 : vector<1x128x384xbf16> to vector<128x384xbf16>
      %cst_30 = arith.constant dense<0.000000e+00> : vector<8x384xf32>
      %58 = tpu.matmul %55, %57, %cst_30 {dimension_numbers = #tpu.dot_dimension_numbers<[1], [0], [0], [1], [0, 0, 1, 1], [], []>} : vector<8x128xbf16>, vector<128x384xbf16>, vector<8x384xf32> -> vector<8x384xf32>
      %c0_31 = arith.constant 0 : index
      %c0_32 = arith.constant 0 : index
      %59 = vector.load %arg11[%c0_31, %c0_32] : memref<8x384xf32, #tpu.memory_space<vmem>>, vector<8x384xf32>
      tpu.vector_store %arg11[%c0_31, %c0_32], %58 {strides = array<i32>} : memref<8x384xf32, #tpu.memory_space<vmem>>, vector<8x384xf32>,
    } else {
    }
    %c0 = arith.constant 0 : index
    %c0_3 = arith.constant 0 : index
    %c0_4 = arith.constant 0 : index
    %6 = vector.load %arg2[%c0, %c0_3, %c0_4] : memref<1x8x128xf32, #tpu.memory_space<vmem>>, vector<1x8x128xf32>
    %7 = vector.shape_cast %6 : vector<1x8x128xf32> to vector<8x128xf32>
    %c0_5 = arith.constant 0 : index
    %c0_6 = arith.constant 0 : index
    %8 = vector.load %arg11[%c0_5, %c0_6] : memref<8x384xf32, #tpu.memory_space<vmem>>, vector<8x384xf32>
    %c0_7 = arith.constant 0 : index
    %c0_8 = arith.constant 0 : index
    %c0_9 = arith.constant 0 : index
    %9 = vector.load %arg6[%c0_7, %c0_8, %c0_9] : memref<1x1x384xf32, #tpu.memory_space<vmem>>, vector<1x1x384xf32>
    %10 = vector.shape_cast %9 : vector<1x1x384xf32> to vector<1x384xf32>
    %11 = vector.broadcast %10 : vector<1x384xf32> to vector<8x384xf32>
    %12 = arith.addf %8, %11 : vector<8x384xf32>
    %13 = arith.truncf %7 : vector<8x128xf32> to vector<8x128xbf16>
    %c0_10 = arith.constant 0 : index
    %c0_11 = arith.constant 0 : index
    %c0_12 = arith.constant 0 : index
    %14 = vector.load %arg5[%c0_10, %c0_11, %c0_12] : memref<1x128x384xbf16, #tpu.memory_space<vmem>>, vector<1x128x384xbf16>
    %15 = vector.shape_cast %14 : vector<1x128x384xbf16> to vector<128x384xbf16>
    %cst = arith.constant dense<0.000000e+00> : vector<8x384xf32>
    %16 = tpu.matmul %13, %15, %cst {dimension_numbers = #tpu.dot_dimension_numbers<[1], [0], [0], [1], [0, 0, 1, 1], [], []>} : vector<8x128xbf16>, vector<128x384xbf16>, vector<8x384xf32> -> vector<8x384xf32>
    %17 = vector.extract_strided_slice %12 {offsets = [0, 0], sizes = [8, 128], strides = [1, 1]} : vector<8x384xf32> to vector<8x128xf32>
    %18 = vector.extract_strided_slice %16 {offsets = [0, 0], sizes = [8, 128], strides = [1, 1]} : vector<8x384xf32> to vector<8x128xf32>
    %19 = arith.addf %17, %18 : vector<8x128xf32>
    %20 = arith.negf %19 : vector<8x128xf32>
    %21 = math.exp %20 : vector<8x128xf32>
    %cst_13 = arith.constant 1.000000e+00 : f32
    %22 = vector.broadcast %cst_13 : f32 to vector<8x128xf32>
    %23 = arith.addf %22, %21 : vector<8x128xf32>
    %24 = arith.divf %22, %23 : vector<8x128xf32>
    %25 = vector.extract_strided_slice %12 {offsets = [0, 128], sizes = [8, 128], strides = [1, 1]} : vector<8x384xf32> to vector<8x128xf32>
    %26 = vector.extract_strided_slice %16 {offsets = [0, 128], sizes = [8, 128], strides = [1, 1]} : vector<8x384xf32> to vector<8x128xf32>
    %27 = arith.addf %25, %26 : vector<8x128xf32>
    %28 = arith.negf %27 : vector<8x128xf32>
    %29 = math.exp %28 : vector<8x128xf32>
    %cst_14 = arith.constant 1.000000e+00 : f32
    %30 = vector.broadcast %cst_14 : f32 to vector<8x128xf32>
    %31 = arith.addf %30, %29 : vector<8x128xf32>
    %32 = arith.divf %30, %31 : vector<8x128xf32>
    %33 = vector.extract_strided_slice %12 {offsets = [0, 256], sizes = [8, 128], strides = [1, 1]} : vector<8x384xf32> to vector<8x128xf32>
    %34 = vector.extract_strided_slice %16 {offsets = [0, 256], sizes = [8, 128], strides = [1, 1]} : vector<8x384xf32> to vector<8x128xf32>
    %c0_15 = arith.constant 0 : index
    %c0_16 = arith.constant 0 : index
    %c0_17 = arith.constant 0 : index
    %35 = vector.load %arg7[%c0_15, %c0_16, %c0_17] : memref<1x1x128xf32, #tpu.memory_space<vmem>>, vector<1x1x128xf32>
    %36 = vector.shape_cast %35 : vector<1x1x128xf32> to vector<1x128xf32>
    %37 = vector.broadcast %36 : vector<1x128xf32> to vector<8x128xf32>
    %38 = arith.addf %34, %37 : vector<8x128xf32>
    %39 = arith.mulf %24, %38 : vector<8x128xf32>
    %40 = arith.addf %33, %39 : vector<8x128xf32>
    %41 = math.tanh %40 : vector<8x128xf32>
    %cst_18 = arith.constant 1.000000e+00 : f32
    %42 = vector.broadcast %cst_18 : f32 to vector<8x128xf32>
    %43 = arith.subf %42, %32 : vector<8x128xf32>
    %44 = arith.mulf %43, %41 : vector<8x128xf32>
    %45 = arith.mulf %32, %7 : vector<8x128xf32>
    %46 = arith.addf %44, %45 : vector<8x128xf32>
    %c0_19 = arith.constant 0 : index
    %c0_20 = arith.constant 0 : index
    %c0_21 = arith.constant 0 : index
    %47 = vector.load %arg9[%c0_19, %c0_20, %c0_21] : memref<1x8x128xf32, #tpu.memory_space<vmem>>, vector<1x8x128xf32>
    %48 = vector.shape_cast %47 : vector<1x8x128xf32> to vector<8x128xf32>
    %49 = vector.shape_cast %46 : vector<8x128xf32> to vector<1x8x128xf32>
    tpu.vector_store %arg9[%c0_19, %c0_20, %c0_21], %49 {strides = array<i32>} : memref<1x8x128xf32, #tpu.memory_space<vmem>>, vector<1x8x128xf32>,
    %c0_22 = arith.constant 0 : index
    %c0_23 = arith.constant 0 : index
    %50 = vector.load %arg10[%c0_22, %c0_23] : memref<8x128xf32, #tpu.memory_space<vmem>>, vector<8x128xf32>
    tpu.vector_store %arg10[%c0_22, %c0_23], %46 {strides = array<i32>} : memref<8x128xf32, #tpu.memory_space<vmem>>, vector<8x128xf32>,
    %c1_i32 = arith.constant 1 : i32
    %51 = arith.cmpi eq, %arg0, %c1_i32 : i32
    %52 = arith.extui %51 : i1 to i32
    %c0_i32_24 = arith.constant 0 : i32
    %53 = arith.cmpi ne, %52, %c0_i32_24 : i32
    scf.if %53 {
      %c0_25 = arith.constant 0 : index
      %c0_26 = arith.constant 0 : index
      %54 = vector.load %arg8[%c0_25, %c0_26] : memref<8x128xf32, #tpu.memory_space<vmem>>, vector<8x128xf32>
      tpu.vector_store %arg8[%c0_25, %c0_26], %46 {strides = array<i32>} : memref<8x128xf32, #tpu.memory_space<vmem>>, vector<8x128xf32>,
    } else {
    }
    return
  }
  func.func @transform_0(%arg0: i32) -> (i32, i32) {
    %c0_i32 = arith.constant 0 : i32
    %c0_i32_0 = arith.constant 0 : i32
    %c0_i32_1 = arith.constant 0 : i32
    return %c0_i32, %c0_i32_0 : i32, i32
  }
  func.func @transform_1(%arg0: i32) -> (i32, i32, i32) {
    %c0_i32 = arith.constant 0 : i32
    %c0_i32_0 = arith.constant 0 : i32
    %c0_i32_1 = arith.constant 0 : i32
    return %arg0, %c0_i32, %c0_i32_0 : i32, i32, i32
  }
  func.func @transform_2(%arg0: i32) -> (i32, i32) {
    %c0_i32 = arith.constant 0 : i32
    %c0_i32_0 = arith.constant 0 : i32
    %c0_i32_1 = arith.constant 0 : i32
    return %c0_i32, %c0_i32_0 : i32, i32
  }
  func.func @transform_3(%arg0: i32) -> (i32, i32, i32) {
    %c1_i32 = arith.constant 1 : i32
    %0 = arith.subi %arg0, %c1_i32 : i32
    %c0_i32 = arith.constant 0 : i32
    %1 = arith.maxsi %0, %c0_i32 : i32
    %c0_i32_0 = arith.constant 0 : i32
    %c0_i32_1 = arith.constant 0 : i32
    %c0_i32_2 = arith.constant 0 : i32
    return %1, %c0_i32_0, %c0_i32_1 : i32, i32, i32
  }
  func.func @transform_4(%arg0: i32) -> (i32, i32, i32) {
    %c0_i32 = arith.constant 0 : i32
    %c0_i32_0 = arith.constant 0 : i32
    %c0_i32_1 = arith.constant 0 : i32
    return %arg0, %c0_i32, %c0_i32_0 : i32, i32, i32
  }
  func.func @transform_5(%arg0: i32) -> (i32, i32, i32) {
    %c0_i32 = arith.constant 0 : i32
    %c0_i32_0 = arith.constant 0 : i32
    %c0_i32_1 = arith.constant 0 : i32
    return %arg0, %c0_i32, %c0_i32_0 : i32, i32, i32
  }
  func.func @transform_6(%arg0: i32) -> (i32, i32, i32) {
    %c0_i32 = arith.constant 0 : i32
    %c0_i32_0 = arith.constant 0 : i32
    %c0_i32_1 = arith.constant 0 : i32
    return %arg0, %c0_i32, %c0_i32_0 : i32, i32, i32
  }
  func.func @transform_7(%arg0: i32) -> (i32, i32) {
    %c0_i32 = arith.constant 0 : i32
    %c0_i32_0 = arith.constant 0 : i32
    %c0_i32_1 = arith.constant 0 : i32
    return %c0_i32, %c0_i32_0 : i32, i32
  }
  func.func @transform_8(%arg0: i32) -> (i32, i32, i32) {
    %c0_i32 = arith.constant 0 : i32
    %c0_i32_0 = arith.constant 0 : i32
    %c0_i32_1 = arith.constant 0 : i32
    return %arg0, %c0_i32, %c0_i32_0 : i32, i32, i32
  }
}

</mosaic_0001>

<llo_original>
// kernel: decoder_forward.2
$region0: #{decoder_forward.2}
  #allocation0 [shape = 'u32[]', space=smem, size = 0x4, offset = 0x4, fixed_abs, tag = 'smem constant byte address 0x4 - core index']
  #allocation1 [shape = 'u32[144,128]{1,0:T(1,128)}', space=vmem, size = 0x12000, scoped, tag = 'internal scratch']
  #allocation2 [shape = 'f32[8,1]{1,0:T(8,128)}', space=vmem, size = 0x1000, scoped, tag = 'scratch operand']
  #allocation3 [shape = 'f32[8,1]{1,0:T(8,128)}', space=vmem, size = 0x1000, scoped, tag = 'scratch operand']
  #allocation4 [shape = 'f32[8,128]{1,0:T(8,128)}', space=vmem, size = 0x1000, scoped, tag = 'scratch operand']
  %s0 = inlined_call_operand.vmem [shape: f32[8,128], index: 0, kind: input, shape index: {}]
  %s1 = inlined_call_operand.vmem [shape: bf16[8,128,128], index: 1, kind: input, shape index: {}]
  %s2 = inlined_call_operand.vmem [shape: f32[8,128], index: 2, kind: input, shape index: {}]
  %s3 = inlined_call_operand.vmem [shape: f32[8,128], index: 3, kind: output, shape index: {}]
  %s4 = sld [smem:[#allocation0]]
  $region30: #{decoder_forward.2} parent=0
    _
  %s6 = ssub.s32 1, %s4
  %s7 = scalar_select 0, %s6, %s4
  // Predicated region
  $region2: #{decoder_forward.2} parent=0 // pred_check
    _
  $region3: #{decoder_forward.2} parent=0 // pred_check_branch
    %9 = sbr.rel (0) target = $region5
  $region4: #{decoder_forward.2} parent=0 // pred_region
    _
  $region5: #{decoder_forward.2} parent=0 // pred_fallthru
    _
  // Predicated region
  $region6: #{decoder_forward.2} parent=0 // pred_check
    _
  $region7: #{decoder_forward.2} parent=0 // pred_check_branch
    %11 = sbr.rel (0) target = $region9
  $region8: #{decoder_forward.2} parent=0 // pred_region
    _
  $region9: #{decoder_forward.2} parent=0 // pred_fallthru
    _
  // Predicated region
  $region10: #{decoder_forward.2} parent=0 // pred_check
    _
  $region11: #{decoder_forward.2} parent=0 // pred_check_branch
    %13 = sbr.rel (0) target = $region13
  $region12: #{decoder_forward.2} parent=0 // pred_region
    _
  $region13: #{decoder_forward.2} parent=0 // pred_fallthru
    _
  %p15 = scmp.eq.s32.totalorder 0, 0
  // Predicated region
  $region14: #{decoder_forward.2} parent=0 // pred_check
    %p16 = pneg %p15
  $region15: #{decoder_forward.2} parent=0 // pred_check_branch
    %18 = sbr.rel (%p16) target = $region17
  $region16: #{decoder_forward.2} parent=0 // pred_region
    %vm19 = vcmask 7168
    %20 = vst.msk [vmem:[#allocation2] sm:$0xff] %vm19, -inf
    %21 = vst.msk [vmem:[#allocation3] sm:$0xff] %vm19, 0.0
    %22 = vst [vmem:[#allocation4] sm:$0xff] 0.0
  $region17: #{decoder_forward.2} parent=0 // pred_fallthru
    _
  %v23 = vld [vmem:[%s1] sm:$0xf]
  %v24 = vld [vmem:[%s1 + $0x4] sm:$0xf]
  %v25 = vld [vmem:[%s1 + $0x8] sm:$0xf]
  %v26 = vld [vmem:[%s1 + $0xc] sm:$0xf]
  %v27 = vld [vmem:[%s1 + $0x10] sm:$0xf]
  %v28 = vld [vmem:[%s1 + $0x14] sm:$0xf]
  %v29 = vld [vmem:[%s1 + $0x18] sm:$0xf]
  %v30 = vld [vmem:[%s1 + $0x1c] sm:$0xf]
  %v31 = vld [vmem:[%s1 + $0x20] sm:$0xf]
  %v32 = vld [vmem:[%s1 + $0x24] sm:$0xf]
  %v33 = vld [vmem:[%s1 + $0x28] sm:$0xf]
  %v34 = vld [vmem:[%s1 + $0x2c] sm:$0xf]
  %v35 = vld [vmem:[%s1 + $0x30] sm:$0xf]
  %v36 = vld [vmem:[%s1 + $0x34] sm:$0xf]
  %v37 = vld [vmem:[%s1 + $0x38] sm:$0xf]
  %v38 = vld [vmem:[%s1 + $0x3c] sm:$0xf]
  %v39 = vld [vmem:[%s1 + $0x40] sm:$0xf]
  %v40 = vld [vmem:[%s1 + $0x44] sm:$0xf]
  %v41 = vld [vmem:[%s1 + $0x48] sm:$0xf]
  %v42 = vld [vmem:[%s1 + $0x4c] sm:$0xf]
  %v43 = vld [vmem:[%s1 + $0x50] sm:$0xf]
  %v44 = vld [vmem:[%s1 + $0x54] sm:$0xf]
  %v45 = vld [vmem:[%s1 + $0x58] sm:$0xf]
  %v46 = vld [vmem:[%s1 + $0x5c] sm:$0xf]
  %v47 = vld [vmem:[%s1 + $0x60] sm:$0xf]
  %v48 = vld [vmem:[%s1 + $0x64] sm:$0xf]
  %v49 = vld [vmem:[%s1 + $0x68] sm:$0xf]
  %v50 = vld [vmem:[%s1 + $0x6c] sm:$0xf]
  %v51 = vld [vmem:[%s1 + $0x70] sm:$0xf]
  %v52 = vld [vmem:[%s1 + $0x74] sm:$0xf]
  %v53 = vld [vmem:[%s1 + $0x78] sm:$0xf]
  %v54 = vld [vmem:[%s1 + $0x7c] sm:$0xf]
  %v55 = vld [vmem:[%s1 + $0x80] sm:$0xf]
  %v56 = vld [vmem:[%s1 + $0x84] sm:$0xf]
  %v57 = vld [vmem:[%s1 + $0x88] sm:$0xf]
  %v58 = vld [vmem:[%s1 + $0x8c] sm:$0xf]
  %v59 = vld [vmem:[%s1 + $0x90] sm:$0xf]
  %v60 = vld [vmem:[%s1 + $0x94] sm:$0xf]
  %v61 = vld [vmem:[%s1 + $0x98] sm:$0xf]
  %v62 = vld [vmem:[%s1 + $0x9c] sm:$0xf]
  %v63 = vld [vmem:[%s1 + $0xa0] sm:$0xf]
  %v64 = vld [vmem:[%s1 + $0xa4] sm:$0xf]
  %v65 = vld [vmem:[%s1 + $0xa8] sm:$0xf]
  %v66 = vld [vmem:[%s1 + $0xac] sm:$0xf]
  %v67 = vld [vmem:[%s1 + $0xb0] sm:$0xf]
  %v68 = vld [vmem:[%s1 + $0xb4] sm:$0xf]
  %v69 = vld [vmem:[%s1 + $0xb8] sm:$0xf]
  %v70 = vld [vmem:[%s1 + $0xbc] sm:$0xf]
  %v71 = vld [vmem:[%s1 + $0xc0] sm:$0xf]
  %v72 = vld [vmem:[%s1 + $0xc4] sm:$0xf]
  %v73 = vld [vmem:[%s1 + $0xc8] sm:$0xf]
  %v74 = vld [vmem:[%s1 + $0xcc] sm:$0xf]
  %v75 = vld [vmem:[%s1 + $0xd0] sm:$0xf]
  %v76 = vld [vmem:[%s1 + $0xd4] sm:$0xf]
  %v77 = vld [vmem:[%s1 + $0xd8] sm:$0xf]
  %v78 = vld [vmem:[%s1 + $0xdc] sm:$0xf]
  %v79 = vld [vmem:[%s1 + $0xe0] sm:$0xf]
  %v80 = vld [vmem:[%s1 + $0xe4] sm:$0xf]
  %v81 = vld [vmem:[%s1 + $0xe8] sm:$0xf]
  %v82 = vld [vmem:[%s1 + $0xec] sm:$0xf]
  %v83 = vld [vmem:[%s1 + $0xf0] sm:$0xf]
  %v84 = vld [vmem:[%s1 + $0xf4] sm:$0xf]
  %v85 = vld [vmem:[%s1 + $0xf8] sm:$0xf]
  %v86 = vld [vmem:[%s1 + $0xfc] sm:$0xf]
  %v87 = vld [vmem:[%s1 + $0x100] sm:$0xf]
  %v88 = vld [vmem:[%s1 + $0x104] sm:$0xf]
  %v89 = vld [vmem:[%s1 + $0x108] sm:$0xf]
  %v90 = vld [vmem:[%s1 + $0x10c] sm:$0xf]
  %v91 = vld [vmem:[%s1 + $0x110] sm:$0xf]
  %v92 = vld [vmem:[%s1 + $0x114] sm:$0xf]
  %v93 = vld [vmem:[%s1 + $0x118] sm:$0xf]
  %v94 = vld [vmem:[%s1 + $0x11c] sm:$0xf]
  %v95 = vld [vmem:[%s1 + $0x120] sm:$0xf]
  %v96 = vld [vmem:[%s1 + $0x124] sm:$0xf]
  %v97 = vld [vmem:[%s1 + $0x128] sm:$0xf]
  %v98 = vld [vmem:[%s1 + $0x12c] sm:$0xf]
  %v99 = vld [vmem:[%s1 + $0x130] sm:$0xf]
  %v100 = vld [vmem:[%s1 + $0x134] sm:$0xf]
  %v101 = vld [vmem:[%s1 + $0x138] sm:$0xf]
  %v102 = vld [vmem:[%s1 + $0x13c] sm:$0xf]
  %v103 = vld [vmem:[%s1 + $0x140] sm:$0xf]
  %v104 = vld [vmem:[%s1 + $0x144] sm:$0xf]
  %v105 = vld [vmem:[%s1 + $0x148] sm:$0xf]
  %v106 = vld [vmem:[%s1 + $0x14c] sm:$0xf]
  %v107 = vld [vmem:[%s1 + $0x150] sm:$0xf]
  %v108 = vld [vmem:[%s1 + $0x154] sm:$0xf]
  %v109 = vld [vmem:[%s1 + $0x158] sm:$0xf]
  %v110 = vld [vmem:[%s1 + $0x15c] sm:$0xf]
  %v111 = vld [vmem:[%s1 + $0x160] sm:$0xf]
  %v112 = vld [vmem:[%s1 + $0x164] sm:$0xf]
  %v113 = vld [vmem:[%s1 + $0x168] sm:$0xf]
  %v114 = vld [vmem:[%s1 + $0x16c] sm:$0xf]
  %v115 = vld [vmem:[%s1 + $0x170] sm:$0xf]
  %v116 = vld [vmem:[%s1 + $0x174] sm:$0xf]
  %v117 = vld [vmem:[%s1 + $0x178] sm:$0xf]
  %v118 = vld [vmem:[%s1 + $0x17c] sm:$0xf]
  %v119 = vld [vmem:[%s1 + $0x180] sm:$0xf]
  %v120 = vld [vmem:[%s1 + $0x184] sm:$0xf]
  %v121 = vld [vmem:[%s1 + $0x188] sm:$0xf]
  %v122 = vld [vmem:[%s1 + $0x18c] sm:$0xf]
  %v123 = vld [vmem:[%s1 + $0x190] sm:$0xf]
  %v124 = vld [vmem:[%s1 + $0x194] sm:$0xf]
  %v125 = vld [vmem:[%s1 + $0x198] sm:$0xf]
  %v126 = vld [vmem:[%s1 + $0x19c] sm:$0xf]
  %v127 = vld [vmem:[%s1 + $0x1a0] sm:$0xf]
  %v128 = vld [vmem:[%s1 + $0x1a4] sm:$0xf]
  %v129 = vld [vmem:[%s1 + $0x1a8] sm:$0xf]
  %v130 = vld [vmem:[%s1 + $0x1ac] sm:$0xf]
  %v131 = vld [vmem:[%s1 + $0x1b0] sm:$0xf]
  %v132 = vld [vmem:[%s1 + $0x1b4] sm:$0xf]
  %v133 = vld [vmem:[%s1 + $0x1b8] sm:$0xf]
  %v134 = vld [vmem:[%s1 + $0x1bc] sm:$0xf]
  %v135 = vld [vmem:[%s1 + $0x1c0] sm:$0xf]
  %v136 = vld [vmem:[%s1 + $0x1c4] sm:$0xf]
  %v137 = vld [vmem:[%s1 + $0x1c8] sm:$0xf]
  %v138 = vld [vmem:[%s1 + $0x1cc] sm:$0xf]
  %v139 = vld [vmem:[%s1 + $0x1d0] sm:$0xf]
  %v140 = vld [vmem:[%s1 + $0x1d4] sm:$0xf]
  %v141 = vld [vmem:[%s1 + $0x1d8] sm:$0xf]
  %v142 = vld [vmem:[%s1 + $0x1dc] sm:$0xf]
  %v143 = vld [vmem:[%s1 + $0x1e0] sm:$0xf]
  %v144 = vld [vmem:[%s1 + $0x1e4] sm:$0xf]
  %v145 = vld [vmem:[%s1 + $0x1e8] sm:$0xf]
  %v146 = vld [vmem:[%s1 + $0x1ec] sm:$0xf]
  %v147 = vld [vmem:[%s1 + $0x1f0] sm:$0xf]
  %v148 = vld [vmem:[%s1 + $0x1f4] sm:$0xf]
  %v149 = vld [vmem:[%s1 + $0x1f8] sm:$0xf]
  %v150 = vld [vmem:[%s1 + $0x1fc] sm:$0xf]
  %v151 = vld [vmem:[%s0] sm:$0xff]
  %v152 = vpack.c.bf16 %v151, %v151
  %v155 = vunpack.c.l.s4 1966171168
  %v156 = vunpack.c.0.s8 %v155
  %v157 = vlaneseq
  %v158 = vshrl.u32 %v157, 7
  %v159 = vsub.s32 %v156, %v158
  %v160 = vrot.slane %v152, %v159
  %v161 = vcombine.high %v160, %v160
  %v163 = vunpack.c.l.s4 1966171168
  %v164 = vunpack.c.0.s8 %v163
  %v165 = vlaneseq
  %v166 = vshrl.u32 %v165, 7
  %v167 = vsub.s32 %v164, %v166
  %v168 = vrot.slane %v160, %v167
  %v170 = vunpack.c.l.s4 1966171168
  %v171 = vunpack.c.0.s8 %v170
  %v172 = vlaneseq
  %v173 = vshrl.u32 %v172, 7
  %v174 = vsub.s32 %v171, %v173
  %v175 = vrot.slane %v161, %v174
  %v176 = vcombine.high %v168, %v168
  %v177 = vcombine.high %v175, %v175
  %v178 = vunpack.i.l.s16 %v168
  %v179 = vunpack.i.h.s16 %v168
  %v180 = vunpack.i.l.s16 %v175
  %v181 = vunpack.i.h.s16 %v175
  %v182 = vunpack.i.l.s16 %v176
  %v183 = vunpack.i.h.s16 %v176
  %v184 = vunpack.i.l.s16 %v177
  %v185 = vunpack.i.h.s16 %v177
  %v186 = vpack.i.b16 %v178, %v178
  %v187 = vlaneseq
  %v188 = vshrl.u32 %v187, 7
  %v189 = vsub.s32 0, %v188
  %v190 = vrot.slane %v186, %v189
  %v208 = vunpack.c.l.b16 %v23
  %v209 = vunpack.c.l.b16 %v24
  %v210 = vunpack.c.l.b16 %v25
  %v211 = vunpack.c.l.b16 %v26
  %v212 = vunpack.c.l.b16 %v27
  %v213 = vunpack.c.l.b16 %v28
  %v214 = vunpack.c.l.b16 %v29
  %v215 = vunpack.c.l.b16 %v30
  %v216 = vunpack.c.l.b16 %v31
  %v217 = vunpack.c.l.b16 %v32
  %v218 = vunpack.c.l.b16 %v33
  %v219 = vunpack.c.l.b16 %v34
  %v220 = vunpack.c.l.b16 %v35
  %v221 = vunpack.c.l.b16 %v36
  %v222 = vunpack.c.l.b16 %v37
  %v223 = vunpack.c.l.b16 %v38
  %v224 = vpack.c.b16 %v209, %v208
  %v225 = vpack.c.b16 %v211, %v210
  %v226 = vpack.c.b16 %v213, %v212
  %v227 = vpack.c.b16 %v215, %v214
  %v228 = vpack.c.b16 %v217, %v216
  %v229 = vpack.c.b16 %v219, %v218
  %v230 = vpack.c.b16 %v221, %v220
  %v231 = vpack.c.b16 %v223, %v222
  %240 = vmatprep.subr.bf16.mxu0 0
  %241 = vmatpush1.bf16.xpose.msra.mxu0 %v224
  %242 = vmatprep.subr.bf16.mxu0 0
  %243 = vmatpush1.bf16.xpose.msra.mxu0 %v225
  %244 = vmatprep.subr.bf16.mxu0 0
  %245 = vmatpush1.bf16.xpose.msra.mxu0 %v226
  %246 = vmatprep.subr.bf16.mxu0 0
  %247 = vmatpush1.bf16.xpose.msra.mxu0 %v227
  %248 = vmatprep.subr.bf16.mxu0 0
  %249 = vmatpush1.bf16.xpose.msra.mxu0 %v228
  %250 = vmatprep.subr.bf16.mxu0 0
  %251 = vmatpush1.bf16.xpose.msra.mxu0 %v229
  %252 = vmatprep.subr.bf16.mxu0 0
  %253 = vmatpush1.bf16.xpose.msra.mxu0 %v230
  %254 = vmatprep.subr.bf16.mxu0 0
  %255 = vmatpush1.bf16.xpose.msra.mxu0 %v231
  %256 = vmatprep.subr.bf16.mxu0 0
  %257 = vmatpush1.bf16.xpose.msra.mxu0 0
  %258 = vmatprep.subr.bf16.mxu0 0
  %259 = vmatpush1.bf16.xpose.msra.mxu0 0
  %260 = vmatprep.subr.bf16.mxu0 0
  %261 = vmatpush1.bf16.xpose.msra.mxu0 0
  %262 = vmatprep.subr.bf16.mxu0 0
  %263 = vmatpush1.bf16.xpose.msra.mxu0 0
  %264 = vmatprep.subr.bf16.mxu0 0
  %265 = vmatpush1.bf16.xpose.msra.mxu0 0
  %266 = vmatprep.subr.bf16.mxu0 0
  %267 = vmatpush1.bf16.xpose.msra.mxu0 0
  %268 = vmatprep.subr.bf16.mxu0 0
  %269 = vmatpush1.bf16.xpose.msra.mxu0 0
  %270 = vmatprep.subr.bf16.mxu0 0
  %271 = vmatpush1.bf16.xpose.msra.mxu0 0
  %272 = vmatprep.mubr.bf16.mxu0 0
  %273 = vmatmul.mubr.bf16.gmra.mrb[0].mxu0 %v190
  %v274 = vpop.f32.mrb[0].mxu0
  %v275 = vadd.f32 0.0, %v274
  %v276 = vpop.f32.mrb[0].mxu0
  %v277 = vpop.f32.mrb[0].mxu0
  %v278 = vpop.f32.mrb[0].mxu0
  %279 = vdwg.mxu0
  %v280 = vpack.i.b16 %v179, %v179
  %v281 = vlaneseq
  %v282 = vshrl.u32 %v281, 7
  %v283 = vsub.s32 0, %v282
  %v284 = vrot.slane %v280, %v283
  %v302 = vunpack.c.l.b16 %v39
  %v303 = vunpack.c.l.b16 %v40
  %v304 = vunpack.c.l.b16 %v41
  %v305 = vunpack.c.l.b16 %v42
  %v306 = vunpack.c.l.b16 %v43
  %v307 = vunpack.c.l.b16 %v44
  %v308 = vunpack.c.l.b16 %v45
  %v309 = vunpack.c.l.b16 %v46
  %v310 = vunpack.c.l.b16 %v47
  %v311 = vunpack.c.l.b16 %v48
  %v312 = vunpack.c.l.b16 %v49
  %v313 = vunpack.c.l.b16 %v50
  %v314 = vunpack.c.l.b16 %v51
  %v315 = vunpack.c.l.b16 %v52
  %v316 = vunpack.c.l.b16 %v53
  %v317 = vunpack.c.l.b16 %v54
  %v318 = vpack.c.b16 %v303, %v302
  %v319 = vpack.c.b16 %v305, %v304
  %v320 = vpack.c.b16 %v307, %v306
  %v321 = vpack.c.b16 %v309, %v308
  %v322 = vpack.c.b16 %v311, %v310
  %v323 = vpack.c.b16 %v313, %v312
  %v324 = vpack.c.b16 %v315, %v314
  %v325 = vpack.c.b16 %v317, %v316
  %334 = vmatprep.subr.bf16.mxu0 0
  %335 = vmatpush1.bf16.xpose.msra.mxu0 %v318
  %336 = vmatprep.subr.bf16.mxu0 0
  %337 = vmatpush1.bf16.xpose.msra.mxu0 %v319
  %338 = vmatprep.subr.bf16.mxu0 0
  %339 = vmatpush1.bf16.xpose.msra.mxu0 %v320
  %340 = vmatprep.subr.bf16.mxu0 0
  %341 = vmatpush1.bf16.xpose.msra.mxu0 %v321
  %342 = vmatprep.subr.bf16.mxu0 0
  %343 = vmatpush1.bf16.xpose.msra.mxu0 %v322
  %344 = vmatprep.subr.bf16.mxu0 0
  %345 = vmatpush1.bf16.xpose.msra.mxu0 %v323
  %346 = vmatprep.subr.bf16.mxu0 0
  %347 = vmatpush1.bf16.xpose.msra.mxu0 %v324
  %348 = vmatprep.subr.bf16.mxu0 0
  %349 = vmatpush1.bf16.xpose.msra.mxu0 %v325
  %350 = vmatprep.subr.bf16.mxu0 0
  %351 = vmatpush1.bf16.xpose.msra.mxu0 0
  %352 = vmatprep.subr.bf16.mxu0 0
  %353 = vmatpush1.bf16.xpose.msra.mxu0 0
  %354 = vmatprep.subr.bf16.mxu0 0
  %355 = vmatpush1.bf16.xpose.msra.mxu0 0
  %356 = vmatprep.subr.bf16.mxu0 0
  %357 = vmatpush1.bf16.xpose.msra.mxu0 0
  %358 = vmatprep.subr.bf16.mxu0 0
  %359 = vmatpush1.bf16.xpose.msra.mxu0 0
  %360 = vmatprep.subr.bf16.mxu0 0
  %361 = vmatpush1.bf16.xpose.msra.mxu0 0
  %362 = vmatprep.subr.bf16.mxu0 0
  %363 = vmatpush1.bf16.xpose.msra.mxu0 0
  %364 = vmatprep.subr.bf16.mxu0 0
  %365 = vmatpush1.bf16.xpose.msra.mxu0 0
  %366 = vmatprep.mubr.bf16.mxu0 0
  %367 = vmatmul.mubr.bf16.gmra.mrb[0].mxu0 %v284
  %v368 = vpop.f32.mrb[0].mxu0
  %v369 = vadd.f32 0.0, %v368
  %v370 = vpop.f32.mrb[0].mxu0
  %v371 = vpop.f32.mrb[0].mxu0
  %v372 = vpop.f32.mrb[0].mxu0
  %373 = vdwg.mxu0
  %v374 = vpack.i.b16 %v180, %v180
  %v375 = vlaneseq
  %v376 = vshrl.u32 %v375, 7
  %v377 = vsub.s32 0, %v376
  %v378 = vrot.slane %v374, %v377
  %v396 = vunpack.c.l.b16 %v55
  %v397 = vunpack.c.l.b16 %v56
  %v398 = vunpack.c.l.b16 %v57
  %v399 = vunpack.c.l.b16 %v58
  %v400 = vunpack.c.l.b16 %v59
  %v401 = vunpack.c.l.b16 %v60
  %v402 = vunpack.c.l.b16 %v61
  %v403 = vunpack.c.l.b16 %v62
  %v404 = vunpack.c.l.b16 %v63
  %v405 = vunpack.c.l.b16 %v64
  %v406 = vunpack.c.l.b16 %v65
  %v407 = vunpack.c.l.b16 %v66
  %v408 = vunpack.c.l.b16 %v67
  %v409 = vunpack.c.l.b16 %v68
  %v410 = vunpack.c.l.b16 %v69
  %v411 = vunpack.c.l.b16 %v70
  %v412 = vpack.c.b16 %v397, %v396
  %v413 = vpack.c.b16 %v399, %v398
  %v414 = vpack.c.b16 %v401, %v400
  %v415 = vpack.c.b16 %v403, %v402
  %v416 = vpack.c.b16 %v405, %v404
  %v417 = vpack.c.b16 %v407, %v406
  %v418 = vpack.c.b16 %v409, %v408
  %v419 = vpack.c.b16 %v411, %v410
  %428 = vmatprep.subr.bf16.mxu0 0
  %429 = vmatpush1.bf16.xpose.msra.mxu0 %v412
  %430 = vmatprep.subr.bf16.mxu0 0
  %431 = vmatpush1.bf16.xpose.msra.mxu0 %v413
  %432 = vmatprep.subr.bf16.mxu0 0
  %433 = vmatpush1.bf16.xpose.msra.mxu0 %v414
  %434 = vmatprep.subr.bf16.mxu0 0
  %435 = vmatpush1.bf16.xpose.msra.mxu0 %v415
  %436 = vmatprep.subr.bf16.mxu0 0
  %437 = vmatpush1.bf16.xpose.msra.mxu0 %v416
  %438 = vmatprep.subr.bf16.mxu0 0
  %439 = vmatpush1.bf16.xpose.msra.mxu0 %v417
  %440 = vmatprep.subr.bf16.mxu0 0
  %441 = vmatpush1.bf16.xpose.msra.mxu0 %v418
  %442 = vmatprep.subr.bf16.mxu0 0
  %443 = vmatpush1.bf16.xpose.msra.mxu0 %v419
  %444 = vmatprep.subr.bf16.mxu0 0
  %445 = vmatpush1.bf16.xpose.msra.mxu0 0
  %446 = vmatprep.subr.bf16.mxu0 0
  %447 = vmatpush1.bf16.xpose.msra.mxu0 0
  %448 = vmatprep.subr.bf16.mxu0 0
  %449 = vmatpush1.bf16.xpose.msra.mxu0 0
  %450 = vmatprep.subr.bf16.mxu0 0
  %451 = vmatpush1.bf16.xpose.msra.mxu0 0
  %452 = vmatprep.subr.bf16.mxu0 0
  %453 = vmatpush1.bf16.xpose.msra.mxu0 0
  %454 = vmatprep.subr.bf16.mxu0 0
  %455 = vmatpush1.bf16.xpose.msra.mxu0 0
  %456 = vmatprep.subr.bf16.mxu0 0
  %457 = vmatpush1.bf16.xpose.msra.mxu0 0
  %458 = vmatprep.subr.bf16.mxu0 0
  %459 = vmatpush1.bf16.xpose.msra.mxu0 0
  %460 = vmatprep.mubr.bf16.mxu0 0
  %461 = vmatmul.mubr.bf16.gmra.mrb[0].mxu0 %v378
  %v462 = vpop.f32.mrb[0].mxu0
  %v463 = vadd.f32 0.0, %v462
  %v464 = vpop.f32.mrb[0].mxu0
  %v465 = vpop.f32.mrb[0].mxu0
  %v466 = vpop.f32.mrb[0].mxu0
  %467 = vdwg.mxu0
  %v468 = vpack.i.b16 %v181, %v181
  %v469 = vlaneseq
  %v470 = vshrl.u32 %v469, 7
  %v471 = vsub.s32 0, %v470
  %v472 = vrot.slane %v468, %v471
  %v490 = vunpack.c.l.b16 %v71
  %v491 = vunpack.c.l.b16 %v72
  %v492 = vunpack.c.l.b16 %v73
  %v493 = vunpack.c.l.b16 %v74
  %v494 = vunpack.c.l.b16 %v75
  %v495 = vunpack.c.l.b16 %v76
  %v496 = vunpack.c.l.b16 %v77
  %v497 = vunpack.c.l.b16 %v78
  %v498 = vunpack.c.l.b16 %v79
  %v499 = vunpack.c.l.b16 %v80
  %v500 = vunpack.c.l.b16 %v81
  %v501 = vunpack.c.l.b16 %v82
  %v502 = vunpack.c.l.b16 %v83
  %v503 = vunpack.c.l.b16 %v84
  %v504 = vunpack.c.l.b16 %v85
  %v505 = vunpack.c.l.b16 %v86
  %v506 = vpack.c.b16 %v491, %v490
  %v507 = vpack.c.b16 %v493, %v492
  %v508 = vpack.c.b16 %v495, %v494
  %v509 = vpack.c.b16 %v497, %v496
  %v510 = vpack.c.b16 %v499, %v498
  %v511 = vpack.c.b16 %v501, %v500
  %v512 = vpack.c.b16 %v503, %v502
  %v513 = vpack.c.b16 %v505, %v504
  %522 = vmatprep.subr.bf16.mxu0 0
  %523 = vmatpush1.bf16.xpose.msra.mxu0 %v506
  %524 = vmatprep.subr.bf16.mxu0 0
  %525 = vmatpush1.bf16.xpose.msra.mxu0 %v507
  %526 = vmatprep.subr.bf16.mxu0 0
  %527 = vmatpush1.bf16.xpose.msra.mxu0 %v508
  %528 = vmatprep.subr.bf16.mxu0 0
  %529 = vmatpush1.bf16.xpose.msra.mxu0 %v509
  %530 = vmatprep.subr.bf16.mxu0 0
  %531 = vmatpush1.bf16.xpose.msra.mxu0 %v510
  %532 = vmatprep.subr.bf16.mxu0 0
  %533 = vmatpush1.bf16.xpose.msra.mxu0 %v511
  %534 = vmatprep.subr.bf16.mxu0 0
  %535 = vmatpush1.bf16.xpose.msra.mxu0 %v512
  %536 = vmatprep.subr.bf16.mxu0 0
  %537 = vmatpush1.bf16.xpose.msra.mxu0 %v513
  %538 = vmatprep.subr.bf16.mxu0 0
  %539 = vmatpush1.bf16.xpose.msra.mxu0 0
  %540 = vmatprep.subr.bf16.mxu0 0
  %541 = vmatpush1.bf16.xpose.msra.mxu0 0
  %542 = vmatprep.subr.bf16.mxu0 0
  %543 = vmatpush1.bf16.xpose.msra.mxu0 0
  %544 = vmatprep.subr.bf16.mxu0 0
  %545 = vmatpush1.bf16.xpose.msra.mxu0 0
  %546 = vmatprep.subr.bf16.mxu0 0
  %547 = vmatpush1.bf16.xpose.msra.mxu0 0
  %548 = vmatprep.subr.bf16.mxu0 0
  %549 = vmatpush1.bf16.xpose.msra.mxu0 0
  %550 = vmatprep.subr.bf16.mxu0 0
  %551 = vmatpush1.bf16.xpose.msra.mxu0 0
  %552 = vmatprep.subr.bf16.mxu0 0
  %553 = vmatpush1.bf16.xpose.msra.mxu0 0
  %554 = vmatprep.mubr.bf16.mxu0 0
  %555 = vmatmul.mubr.bf16.gmra.mrb[0].mxu0 %v472
  %v556 = vpop.f32.mrb[0].mxu0
  %v557 = vadd.f32 0.0, %v556
  %v558 = vpop.f32.mrb[0].mxu0
  %v559 = vpop.f32.mrb[0].mxu0
  %v560 = vpop.f32.mrb[0].mxu0
  %561 = vdwg.mxu0
  %v562 = vpack.i.b16 %v182, %v182
  %v563 = vlaneseq
  %v564 = vshrl.u32 %v563, 7
  %v565 = vsub.s32 0, %v564
  %v566 = vrot.slane %v562, %v565
  %v584 = vunpack.c.l.b16 %v87
  %v585 = vunpack.c.l.b16 %v88
  %v586 = vunpack.c.l.b16 %v89
  %v587 = vunpack.c.l.b16 %v90
  %v588 = vunpack.c.l.b16 %v91
  %v589 = vunpack.c.l.b16 %v92
  %v590 = vunpack.c.l.b16 %v93
  %v591 = vunpack.c.l.b16 %v94
  %v592 = vunpack.c.l.b16 %v95
  %v593 = vunpack.c.l.b16 %v96
  %v594 = vunpack.c.l.b16 %v97
  %v595 = vunpack.c.l.b16 %v98
  %v596 = vunpack.c.l.b16 %v99
  %v597 = vunpack.c.l.b16 %v100
  %v598 = vunpack.c.l.b16 %v101
  %v599 = vunpack.c.l.b16 %v102
  %v600 = vpack.c.b16 %v585, %v584
  %v601 = vpack.c.b16 %v587, %v586
  %v602 = vpack.c.b16 %v589, %v588
  %v603 = vpack.c.b16 %v591, %v590
  %v604 = vpack.c.b16 %v593, %v592
  %v605 = vpack.c.b16 %v595, %v594
  %v606 = vpack.c.b16 %v597, %v596
  %v607 = vpack.c.b16 %v599, %v598
  %616 = vmatprep.subr.bf16.mxu0 0
  %617 = vmatpush1.bf16.xpose.msra.mxu0 %v600
  %618 = vmatprep.subr.bf16.mxu0 0
  %619 = vmatpush1.bf16.xpose.msra.mxu0 %v601
  %620 = vmatprep.subr.bf16.mxu0 0
  %621 = vmatpush1.bf16.xpose.msra.mxu0 %v602
  %622 = vmatprep.subr.bf16.mxu0 0
  %623 = vmatpush1.bf16.xpose.msra.mxu0 %v603
  %624 = vmatprep.subr.bf16.mxu0 0
  %625 = vmatpush1.bf16.xpose.msra.mxu0 %v604
  %626 = vmatprep.subr.bf16.mxu0 0
  %627 = vmatpush1.bf16.xpose.msra.mxu0 %v605
  %628 = vmatprep.subr.bf16.mxu0 0
  %629 = vmatpush1.bf16.xpose.msra.mxu0 %v606
  %630 = vmatprep.subr.bf16.mxu0 0
  %631 = vmatpush1.bf16.xpose.msra.mxu0 %v607
  %632 = vmatprep.subr.bf16.mxu0 0
  %633 = vmatpush1.bf16.xpose.msra.mxu0 0
  %634 = vmatprep.subr.bf16.mxu0 0
  %635 = vmatpush1.bf16.xpose.msra.mxu0 0
  %636 = vmatprep.subr.bf16.mxu0 0
  %637 = vmatpush1.bf16.xpose.msra.mxu0 0
  %638 = vmatprep.subr.bf16.mxu0 0
  %639 = vmatpush1.bf16.xpose.msra.mxu0 0
  %640 = vmatprep.subr.bf16.mxu0 0
  %641 = vmatpush1.bf16.xpose.msra.mxu0 0
  %642 = vmatprep.subr.bf16.mxu0 0
  %643 = vmatpush1.bf16.xpose.msra.mxu0 0
  %644 = vmatprep.subr.bf16.mxu0 0
  %645 = vmatpush1.bf16.xpose.msra.mxu0 0
  %646 = vmatprep.subr.bf16.mxu0 0
  %647 = vmatpush1.bf16.xpose.msra.mxu0 0
  %648 = vmatprep.mubr.bf16.mxu0 0
  %649 = vmatmul.mubr.bf16.gmra.mrb[0].mxu0 %v566
  %v650 = vpop.f32.mrb[0].mxu0
  %v651 = vadd.f32 0.0, %v650
  %v652 = vpop.f32.mrb[0].mxu0
  %v653 = vpop.f32.mrb[0].mxu0
  %v654 = vpop.f32.mrb[0].mxu0
  %655 = vdwg.mxu0
  %v656 = vpack.i.b16 %v183, %v183
  %v657 = vlaneseq
  %v658 = vshrl.u32 %v657, 7
  %v659 = vsub.s32 0, %v658
  %v660 = vrot.slane %v656, %v659
  %v678 = vunpack.c.l.b16 %v103
  %v679 = vunpack.c.l.b16 %v104
  %v680 = vunpack.c.l.b16 %v105
  %v681 = vunpack.c.l.b16 %v106
  %v682 = vunpack.c.l.b16 %v107
  %v683 = vunpack.c.l.b16 %v108
  %v684 = vunpack.c.l.b16 %v109
  %v685 = vunpack.c.l.b16 %v110
  %v686 = vunpack.c.l.b16 %v111
  %v687 = vunpack.c.l.b16 %v112
  %v688 = vunpack.c.l.b16 %v113
  %v689 = vunpack.c.l.b16 %v114
  %v690 = vunpack.c.l.b16 %v115
  %v691 = vunpack.c.l.b16 %v116
  %v692 = vunpack.c.l.b16 %v117
  %v693 = vunpack.c.l.b16 %v118
  %v694 = vpack.c.b16 %v679, %v678
  %v695 = vpack.c.b16 %v681, %v680
  %v696 = vpack.c.b16 %v683, %v682
  %v697 = vpack.c.b16 %v685, %v684
  %v698 = vpack.c.b16 %v687, %v686
  %v699 = vpack.c.b16 %v689, %v688
  %v700 = vpack.c.b16 %v691, %v690
  %v701 = vpack.c.b16 %v693, %v692
  %710 = vmatprep.subr.bf16.mxu0 0
  %711 = vmatpush1.bf16.xpose.msra.mxu0 %v694
  %712 = vmatprep.subr.bf16.mxu0 0
  %713 = vmatpush1.bf16.xpose.msra.mxu0 %v695
  %714 = vmatprep.subr.bf16.mxu0 0
  %715 = vmatpush1.bf16.xpose.msra.mxu0 %v696
  %716 = vmatprep.subr.bf16.mxu0 0
  %717 = vmatpush1.bf16.xpose.msra.mxu0 %v697
  %718 = vmatprep.subr.bf16.mxu0 0
  %719 = vmatpush1.bf16.xpose.msra.mxu0 %v698
  %720 = vmatprep.subr.bf16.mxu0 0
  %721 = vmatpush1.bf16.xpose.msra.mxu0 %v699
  %722 = vmatprep.subr.bf16.mxu0 0
  %723 = vmatpush1.bf16.xpose.msra.mxu0 %v700
  %724 = vmatprep.subr.bf16.mxu0 0
  %725 = vmatpush1.bf16.xpose.msra.mxu0 %v701
  %726 = vmatprep.subr.bf16.mxu0 0
  %727 = vmatpush1.bf16.xpose.msra.mxu0 0
  %728 = vmatprep.subr.bf16.mxu0 0
  %729 = vmatpush1.bf16.xpose.msra.mxu0 0
  %730 = vmatprep.subr.bf16.mxu0 0
  %731 = vmatpush1.bf16.xpose.msra.mxu0 0
  %732 = vmatprep.subr.bf16.mxu0 0
  %733 = vmatpush1.bf16.xpose.msra.mxu0 0
  %734 = vmatprep.subr.bf16.mxu0 0
  %735 = vmatpush1.bf16.xpose.msra.mxu0 0
  %736 = vmatprep.subr.bf16.mxu0 0
  %737 = vmatpush1.bf16.xpose.msra.mxu0 0
  %738 = vmatprep.subr.bf16.mxu0 0
  %739 = vmatpush1.bf16.xpose.msra.mxu0 0
  %740 = vmatprep.subr.bf16.mxu0 0
  %741 = vmatpush1.bf16.xpose.msra.mxu0 0
  %742 = vmatprep.mubr.bf16.mxu0 0
  %743 = vmatmul.mubr.bf16.gmra.mrb[0].mxu0 %v660
  %v744 = vpop.f32.mrb[0].mxu0
  %v745 = vadd.f32 0.0, %v744
  %v746 = vpop.f32.mrb[0].mxu0
  %v747 = vpop.f32.mrb[0].mxu0
  %v748 = vpop.f32.mrb[0].mxu0
  %749 = vdwg.mxu0
  %v750 = vpack.i.b16 %v184, %v184
  %v751 = vlaneseq
  %v752 = vshrl.u32 %v751, 7
  %v753 = vsub.s32 0, %v752
  %v754 = vrot.slane %v750, %v753
  %v772 = vunpack.c.l.b16 %v119
  %v773 = vunpack.c.l.b16 %v120
  %v774 = vunpack.c.l.b16 %v121
  %v775 = vunpack.c.l.b16 %v122
  %v776 = vunpack.c.l.b16 %v123
  %v777 = vunpack.c.l.b16 %v124
  %v778 = vunpack.c.l.b16 %v125
  %v779 = vunpack.c.l.b16 %v126
  %v780 = vunpack.c.l.b16 %v127
  %v781 = vunpack.c.l.b16 %v128
  %v782 = vunpack.c.l.b16 %v129
  %v783 = vunpack.c.l.b16 %v130
  %v784 = vunpack.c.l.b16 %v131
  %v785 = vunpack.c.l.b16 %v132
  %v786 = vunpack.c.l.b16 %v133
  %v787 = vunpack.c.l.b16 %v134
  %v788 = vpack.c.b16 %v773, %v772
  %v789 = vpack.c.b16 %v775, %v774
  %v790 = vpack.c.b16 %v777, %v776
  %v791 = vpack.c.b16 %v779, %v778
  %v792 = vpack.c.b16 %v781, %v780
  %v793 = vpack.c.b16 %v783, %v782
  %v794 = vpack.c.b16 %v785, %v784
  %v795 = vpack.c.b16 %v787, %v786
  %804 = vmatprep.subr.bf16.mxu0 0
  %805 = vmatpush1.bf16.xpose.msra.mxu0 %v788
  %806 = vmatprep.subr.bf16.mxu0 0
  %807 = vmatpush1.bf16.xpose.msra.mxu0 %v789
  %808 = vmatprep.subr.bf16.mxu0 0
  %809 = vmatpush1.bf16.xpose.msra.mxu0 %v790
  %810 = vmatprep.subr.bf16.mxu0 0
  %811 = vmatpush1.bf16.xpose.msra.mxu0 %v791
  %812 = vmatprep.subr.bf16.mxu0 0
  %813 = vmatpush1.bf16.xpose.msra.mxu0 %v792
  %814 = vmatprep.subr.bf16.mxu0 0
  %815 = vmatpush1.bf16.xpose.msra.mxu0 %v793
  %816 = vmatprep.subr.bf16.mxu0 0
  %817 = vmatpush1.bf16.xpose.msra.mxu0 %v794
  %818 = vmatprep.subr.bf16.mxu0 0
  %819 = vmatpush1.bf16.xpose.msra.mxu0 %v795
  %820 = vmatprep.subr.bf16.mxu0 0
  %821 = vmatpush1.bf16.xpose.msra.mxu0 0
  %822 = vmatprep.subr.bf16.mxu0 0
  %823 = vmatpush1.bf16.xpose.msra.mxu0 0
  %824 = vmatprep.subr.bf16.mxu0 0
  %825 = vmatpush1.bf16.xpose.msra.mxu0 0
  %826 = vmatprep.subr.bf16.mxu0 0
  %827 = vmatpush1.bf16.xpose.msra.mxu0 0
  %828 = vmatprep.subr.bf16.mxu0 0
  %829 = vmatpush1.bf16.xpose.msra.mxu0 0
  %830 = vmatprep.subr.bf16.mxu0 0
  %831 = vmatpush1.bf16.xpose.msra.mxu0 0
  %832 = vmatprep.subr.bf16.mxu0 0
  %833 = vmatpush1.bf16.xpose.msra.mxu0 0
  %834 = vmatprep.subr.bf16.mxu0 0
  %835 = vmatpush1.bf16.xpose.msra.mxu0 0
  %836 = vmatprep.mubr.bf16.mxu0 0
  %837 = vmatmul.mubr.bf16.gmra.mrb[0].mxu0 %v754
  %v838 = vpop.f32.mrb[0].mxu0
  %v839 = vadd.f32 0.0, %v838
  %v840 = vpop.f32.mrb[0].mxu0
  %v841 = vpop.f32.mrb[0].mxu0
  %v842 = vpop.f32.mrb[0].mxu0
  %843 = vdwg.mxu0
  %v844 = vpack.i.b16 %v185, %v185
  %v845 = vlaneseq
  %v846 = vshrl.u32 %v845, 7
  %v847 = vsub.s32 0, %v846
  %v848 = vrot.slane %v844, %v847
  %v866 = vunpack.c.l.b16 %v135
  %v867 = vunpack.c.l.b16 %v136
  %v868 = vunpack.c.l.b16 %v137
  %v869 = vunpack.c.l.b16 %v138
  %v870 = vunpack.c.l.b16 %v139
  %v871 = vunpack.c.l.b16 %v140
  %v872 = vunpack.c.l.b16 %v141
  %v873 = vunpack.c.l.b16 %v142
  %v874 = vunpack.c.l.b16 %v143
  %v875 = vunpack.c.l.b16 %v144
  %v876 = vunpack.c.l.b16 %v145
  %v877 = vunpack.c.l.b16 %v146
  %v878 = vunpack.c.l.b16 %v147
  %v879 = vunpack.c.l.b16 %v148
  %v880 = vunpack.c.l.b16 %v149
  %v881 = vunpack.c.l.b16 %v150
  %v882 = vpack.c.b16 %v867, %v866
  %v883 = vpack.c.b16 %v869, %v868
  %v884 = vpack.c.b16 %v871, %v870
  %v885 = vpack.c.b16 %v873, %v872
  %v886 = vpack.c.b16 %v875, %v874
  %v887 = vpack.c.b16 %v877, %v876
  %v888 = vpack.c.b16 %v879, %v878
  %v889 = vpack.c.b16 %v881, %v880
  %898 = vmatprep.subr.bf16.mxu0 0
  %899 = vmatpush1.bf16.xpose.msra.mxu0 %v882
  %900 = vmatprep.subr.bf16.mxu0 0
  %901 = vmatpush1.bf16.xpose.msra.mxu0 %v883
  %902 = vmatprep.subr.bf16.mxu0 0
  %903 = vmatpush1.bf16.xpose.msra.mxu0 %v884
  %904 = vmatprep.subr.bf16.mxu0 0
  %905 = vmatpush1.bf16.xpose.msra.mxu0 %v885
  %906 = vmatprep.subr.bf16.mxu0 0
  %907 = vmatpush1.bf16.xpose.msra.mxu0 %v886
  %908 = vmatprep.subr.bf16.mxu0 0
  %909 = vmatpush1.bf16.xpose.msra.mxu0 %v887
  %910 = vmatprep.subr.bf16.mxu0 0
  %911 = vmatpush1.bf16.xpose.msra.mxu0 %v888
  %912 = vmatprep.subr.bf16.mxu0 0
  %913 = vmatpush1.bf16.xpose.msra.mxu0 %v889
  %914 = vmatprep.subr.bf16.mxu0 0
  %915 = vmatpush1.bf16.xpose.msra.mxu0 0
  %916 = vmatprep.subr.bf16.mxu0 0
  %917 = vmatpush1.bf16.xpose.msra.mxu0 0
  %918 = vmatprep.subr.bf16.mxu0 0
  %919 = vmatpush1.bf16.xpose.msra.mxu0 0
  %920 = vmatprep.subr.bf16.mxu0 0
  %921 = vmatpush1.bf16.xpose.msra.mxu0 0
  %922 = vmatprep.subr.bf16.mxu0 0
  %923 = vmatpush1.bf16.xpose.msra.mxu0 0
  %924 = vmatprep.subr.bf16.mxu0 0
  %925 = vmatpush1.bf16.xpose.msra.mxu0 0
  %926 = vmatprep.subr.bf16.mxu0 0
  %927 = vmatpush1.bf16.xpose.msra.mxu0 0
  %928 = vmatprep.subr.bf16.mxu0 0
  %929 = vmatpush1.bf16.xpose.msra.mxu0 0
  %930 = vmatprep.mubr.bf16.mxu0 0
  %931 = vmatmul.mubr.bf16.gmra.mrb[0].mxu0 %v848
  %v932 = vpop.f32.mrb[0].mxu0
  %v933 = vadd.f32 0.0, %v932
  %v934 = vpop.f32.mrb[0].mxu0
  %v935 = vpop.f32.mrb[0].mxu0
  %v936 = vpop.f32.mrb[0].mxu0
  %937 = vdwg.mxu0
  %v938 = vld [vmem:[#allocation2] sm:$0xff]
  %v947 = vrot.slane %v369, 7
  %vm948 = vcmask 1041409
  %v949 = vsel %vm948, %v947, %v275
  %v950 = vrot.slane %v463, 6
  %vm951 = vcmask 1042434
  %v952 = vsel %vm951, %v950, %v949
  %v953 = vrot.slane %v557, 5
  %vm954 = vcmask 1043459
  %v955 = vsel %vm954, %v953, %v952
  %v956 = vrot.slane %v651, 4
  %vm957 = vcmask 1044484
  %v958 = vsel %vm957, %v956, %v955
  %v959 = vrot.slane %v745, 3
  %vm960 = vcmask 1045509
  %v961 = vsel %vm960, %v959, %v958
  %v962 = vrot.slane %v839, 2
  %vm963 = vcmask 1046534
  %v964 = vsel %vm963, %v962, %v961
  %v965 = vrot.slane %v933, 1
  %vm966 = vcmask 1047559
  %v967 = vsel %vm966, %v965, %v964
  %969 = vmax.xlane.f32.xlu0 %v967
  %v970 = vpop.xlane.xlu0 %969
  %v971 = vmax.f32 %v938, %v970
  %v972 = vsub.f32 %v938, %v971
  %v973 = vmul.f32 %v972, 1.442695
  %v974 = vpow.pop %v973
  %976 = vset.pattern.permute.xlu0 0
  %977 = vperm.xlu0 %976, %v971
  %v978 = vpop.permute.xlu0 %977
  %v979 = vrot.slane %v978, 1
  %v980 = vrot.slane %v978, 2
  %v981 = vrot.slane %v978, 3
  %v982 = vrot.slane %v978, 4
  %v983 = vrot.slane %v978, 5
  %v984 = vrot.slane %v978, 6
  %v985 = vrot.slane %v978, 7
  %v994 = vsub.f32 %v275, %v978
  %v995 = vsub.f32 %v369, %v979
  %v996 = vsub.f32 %v463, %v980
  %v997 = vsub.f32 %v557, %v981
  %v998 = vsub.f32 %v651, %v982
  %v999 = vsub.f32 %v745, %v983
  %v1000 = vsub.f32 %v839, %v984
  %v1001 = vsub.f32 %v933, %v985
  %v1002 = vmul.f32 %v994, 1.442695
  %v1003 = vpow.pop %v1002
  %v1004 = vmul.f32 %v995, 1.442695
  %v1005 = vpow.pop %v1004
  %v1006 = vmul.f32 %v996, 1.442695
  %v1007 = vpow.pop %v1006
  %v1008 = vmul.f32 %v997, 1.442695
  %v1009 = vpow.pop %v1008
  %v1010 = vmul.f32 %v998, 1.442695
  %v1011 = vpow.pop %v1010
  %v1012 = vmul.f32 %v999, 1.442695
  %v1013 = vpow.pop %v1012
  %v1014 = vmul.f32 %v1000, 1.442695
  %v1015 = vpow.pop %v1014
  %v1016 = vmul.f32 %v1001, 1.442695
  %v1017 = vpow.pop %v1016
  %v1018 = vld [vmem:[#allocation3] sm:$0xff]
  %v1019 = vmul.f32 %v974, %v1018
  %v1028 = vrot.slane %v1005, 7
  %v1029 = vsel %vm948, %v1028, %v1003
  %v1030 = vrot.slane %v1007, 6
  %v1031 = vsel %vm951, %v1030, %v1029
  %v1032 = vrot.slane %v1009, 5
  %v1033 = vsel %vm954, %v1032, %v1031
  %v1034 = vrot.slane %v1011, 4
  %v1035 = vsel %vm957, %v1034, %v1033
  %v1036 = vrot.slane %v1013, 3
  %v1037 = vsel %vm960, %v1036, %v1035
  %v1038 = vrot.slane %v1015, 2
  %v1039 = vsel %vm963, %v1038, %v1037
  %v1040 = vrot.slane %v1017, 1
  %v1041 = vsel %vm966, %v1040, %v1039
  %1043 = vadd.xlane.f32.xlu0 %v1041
  %v1044 = vpop.xlane.xlu0 %1043
  %v1045 = vadd.f32 %v1019, %v1044
  %vm1046 = vcmask 7168
  %1047 = vst.msk [vmem:[#allocation3] sm:$0xff] %vm1046, %v1045
  %v1048 = vld [vmem:[%s2] sm:$0xff]
  %v1050 = vrot.slane %v1048, 1
  %v1051 = vrot.slane %v1048, 2
  %v1052 = vrot.slane %v1048, 3
  %v1053 = vrot.slane %v1048, 4
  %v1054 = vrot.slane %v1048, 5
  %v1055 = vrot.slane %v1048, 6
  %v1056 = vrot.slane %v1048, 7
  %v1065 = vmul.f32 %v1003, %v1048
  %v1066 = vmul.f32 %v1005, %v1050
  %v1067 = vmul.f32 %v1007, %v1051
  %v1068 = vmul.f32 %v1009, %v1052
  %v1069 = vmul.f32 %v1011, %v1053
  %v1070 = vmul.f32 %v1013, %v1054
  %v1071 = vmul.f32 %v1015, %v1055
  %v1072 = vmul.f32 %v1017, %v1056
  %v1073 = vpack.c.bf16 %v1065, %v1065
  %v1074 = vpack.c.bf16 %v1066, %v1066
  %v1075 = vpack.c.bf16 %v1067, %v1067
  %v1076 = vpack.c.bf16 %v1068, %v1068
  %v1077 = vpack.c.bf16 %v1069, %v1069
  %v1078 = vpack.c.bf16 %v1070, %v1070
  %v1079 = vpack.c.bf16 %v1071, %v1071
  %v1080 = vpack.c.bf16 %v1072, %v1072
  %v1081 = vld [vmem:[#allocation4] sm:$0xff]
  %1083 = vset.pattern.permute.xlu0 0
  %1084 = vperm.xlu0 %1083, %v974
  %v1085 = vpop.permute.xlu0 %1084
  %v1087 = vmul.f32 %v1085, %v1081
  %1088 = vmatprep.subr.bf16.mxu0 0
  %1089 = vmatpush1.bf16.msra.mxu0 %v224
  %1090 = vmatprep.subr.bf16.mxu0 0
  %1091 = vmatpush1.bf16.msra.mxu0 %v225
  %1092 = vmatprep.subr.bf16.mxu0 0
  %1093 = vmatpush1.bf16.msra.mxu0 %v226
  %1094 = vmatprep.subr.bf16.mxu0 0
  %1095 = vmatpush1.bf16.msra.mxu0 %v227
  %1096 = vmatprep.subr.bf16.mxu0 0
  %1097 = vmatpush1.bf16.msra.mxu0 %v228
  %1098 = vmatprep.subr.bf16.mxu0 0
  %1099 = vmatpush1.bf16.msra.mxu0 %v229
  %1100 = vmatprep.subr.bf16.mxu0 0
  %1101 = vmatpush1.bf16.msra.mxu0 %v230
  %1102 = vmatprep.subr.bf16.mxu0 0
  %1103 = vmatpush1.bf16.msra.mxu0 %v231
  %1104 = vmatprep.subr.bf16.mxu0 0
  %1105 = vmatpush1.bf16.msra.mxu0 0
  %1106 = vmatprep.subr.bf16.mxu0 0
  %1107 = vmatpush1.bf16.msra.mxu0 0
  %1108 = vmatprep.subr.bf16.mxu0 0
  %1109 = vmatpush1.bf16.msra.mxu0 0
  %1110 = vmatprep.subr.bf16.mxu0 0
  %1111 = vmatpush1.bf16.msra.mxu0 0
  %1112 = vmatprep.subr.bf16.mxu0 0
  %1113 = vmatpush1.bf16.msra.mxu0 0
  %1114 = vmatprep.subr.bf16.mxu0 0
  %1115 = vmatpush1.bf16.msra.mxu0 0
  %1116 = vmatprep.subr.bf16.mxu0 0
  %1117 = vmatpush1.bf16.msra.mxu0 0
  %1118 = vmatprep.subr.bf16.mxu0 0
  %1119 = vmatpush1.bf16.msra.mxu0 0
  %1120 = vmatprep.mubr.bf16.mxu0 0
  %1121 = vmatmul.mubr.bf16.gmra.mrb[0].mxu0 %v1073
  %v1122 = vpop.f32.mrb[0].mxu0
  %v1123 = vadd.f32 0.0, %v1122
  %v1124 = vpop.f32.mrb[0].mxu0
  %v1125 = vpop.f32.mrb[0].mxu0
  %v1126 = vpop.f32.mrb[0].mxu0
  %1127 = vdwg.mxu0
  %1128 = vmatprep.subr.bf16.mxu0 0
  %1129 = vmatpush1.bf16.msra.mxu0 %v318
  %1130 = vmatprep.subr.bf16.mxu0 0
  %1131 = vmatpush1.bf16.msra.mxu0 %v319
  %1132 = vmatprep.subr.bf16.mxu0 0
  %1133 = vmatpush1.bf16.msra.mxu0 %v320
  %1134 = vmatprep.subr.bf16.mxu0 0
  %1135 = vmatpush1.bf16.msra.mxu0 %v321
  %1136 = vmatprep.subr.bf16.mxu0 0
  %1137 = vmatpush1.bf16.msra.mxu0 %v322
  %1138 = vmatprep.subr.bf16.mxu0 0
  %1139 = vmatpush1.bf16.msra.mxu0 %v323
  %1140 = vmatprep.subr.bf16.mxu0 0
  %1141 = vmatpush1.bf16.msra.mxu0 %v324
  %1142 = vmatprep.subr.bf16.mxu0 0
  %1143 = vmatpush1.bf16.msra.mxu0 %v325
  %1144 = vmatprep.subr.bf16.mxu0 0
  %1145 = vmatpush1.bf16.msra.mxu0 0
  %1146 = vmatprep.subr.bf16.mxu0 0
  %1147 = vmatpush1.bf16.msra.mxu0 0
  %1148 = vmatprep.subr.bf16.mxu0 0
  %1149 = vmatpush1.bf16.msra.mxu0 0
  %1150 = vmatprep.subr.bf16.mxu0 0
  %1151 = vmatpush1.bf16.msra.mxu0 0
  %1152 = vmatprep.subr.bf16.mxu0 0
  %1153 = vmatpush1.bf16.msra.mxu0 0
  %1154 = vmatprep.subr.bf16.mxu0 0
  %1155 = vmatpush1.bf16.msra.mxu0 0
  %1156 = vmatprep.subr.bf16.mxu0 0
  %1157 = vmatpush1.bf16.msra.mxu0 0
  %1158 = vmatprep.subr.bf16.mxu0 0
  %1159 = vmatpush1.bf16.msra.mxu0 0
  %1160 = vmatprep.mubr.bf16.mxu0 0
  %1161 = vmatmul.mubr.bf16.gmra.mrb[0].mxu0 %v1074
  %v1162 = vpop.f32.mrb[0].mxu0
  %v1163 = vadd.f32 0.0, %v1162
  %v1164 = vpop.f32.mrb[0].mxu0
  %v1165 = vpop.f32.mrb[0].mxu0
  %v1166 = vpop.f32.mrb[0].mxu0
  %1167 = vdwg.mxu0
  %1168 = vmatprep.subr.bf16.mxu0 0
  %1169 = vmatpush1.bf16.msra.mxu0 %v412
  %1170 = vmatprep.subr.bf16.mxu0 0
  %1171 = vmatpush1.bf16.msra.mxu0 %v413
  %1172 = vmatprep.subr.bf16.mxu0 0
  %1173 = vmatpush1.bf16.msra.mxu0 %v414
  %1174 = vmatprep.subr.bf16.mxu0 0
  %1175 = vmatpush1.bf16.msra.mxu0 %v415
  %1176 = vmatprep.subr.bf16.mxu0 0
  %1177 = vmatpush1.bf16.msra.mxu0 %v416
  %1178 = vmatprep.subr.bf16.mxu0 0
  %1179 = vmatpush1.bf16.msra.mxu0 %v417
  %1180 = vmatprep.subr.bf16.mxu0 0
  %1181 = vmatpush1.bf16.msra.mxu0 %v418
  %1182 = vmatprep.subr.bf16.mxu0 0
  %1183 = vmatpush1.bf16.msra.mxu0 %v419
  %1184 = vmatprep.subr.bf16.mxu0 0
  %1185 = vmatpush1.bf16.msra.mxu0 0
  %1186 = vmatprep.subr.bf16.mxu0 0
  %1187 = vmatpush1.bf16.msra.mxu0 0
  %1188 = vmatprep.subr.bf16.mxu0 0
  %1189 = vmatpush1.bf16.msra.mxu0 0
  %1190 = vmatprep.subr.bf16.mxu0 0
  %1191 = vmatpush1.bf16.msra.mxu0 0
  %1192 = vmatprep.subr.bf16.mxu0 0
  %1193 = vmatpush1.bf16.msra.mxu0 0
  %1194 = vmatprep.subr.bf16.mxu0 0
  %1195 = vmatpush1.bf16.msra.mxu0 0
  %1196 = vmatprep.subr.bf16.mxu0 0
  %1197 = vmatpush1.bf16.msra.mxu0 0
  %1198 = vmatprep.subr.bf16.mxu0 0
  %1199 = vmatpush1.bf16.msra.mxu0 0
  %1200 = vmatprep.mubr.bf16.mxu0 0
  %1201 = vmatmul.mubr.bf16.gmra.mrb[0].mxu0 %v1075
  %v1202 = vpop.f32.mrb[0].mxu0
  %v1203 = vadd.f32 0.0, %v1202
  %v1204 = vpop.f32.mrb[0].mxu0
  %v1205 = vpop.f32.mrb[0].mxu0
  %v1206 = vpop.f32.mrb[0].mxu0
  %1207 = vdwg.mxu0
  %1208 = vmatprep.subr.bf16.mxu0 0
  %1209 = vmatpush1.bf16.msra.mxu0 %v506
  %1210 = vmatprep.subr.bf16.mxu0 0
  %1211 = vmatpush1.bf16.msra.mxu0 %v507
  %1212 = vmatprep.subr.bf16.mxu0 0
  %1213 = vmatpush1.bf16.msra.mxu0 %v508
  %1214 = vmatprep.subr.bf16.mxu0 0
  %1215 = vmatpush1.bf16.msra.mxu0 %v509
  %1216 = vmatprep.subr.bf16.mxu0 0
  %1217 = vmatpush1.bf16.msra.mxu0 %v510
  %1218 = vmatprep.subr.bf16.mxu0 0
  %1219 = vmatpush1.bf16.msra.mxu0 %v511
  %1220 = vmatprep.subr.bf16.mxu0 0
  %1221 = vmatpush1.bf16.msra.mxu0 %v512
  %1222 = vmatprep.subr.bf16.mxu0 0
  %1223 = vmatpush1.bf16.msra.mxu0 %v513
  %1224 = vmatprep.subr.bf16.mxu0 0
  %1225 = vmatpush1.bf16.msra.mxu0 0
  %1226 = vmatprep.subr.bf16.mxu0 0
  %1227 = vmatpush1.bf16.msra.mxu0 0
  %1228 = vmatprep.subr.bf16.mxu0 0
  %1229 = vmatpush1.bf16.msra.mxu0 0
  %1230 = vmatprep.subr.bf16.mxu0 0
  %1231 = vmatpush1.bf16.msra.mxu0 0
  %1232 = vmatprep.subr.bf16.mxu0 0
  %1233 = vmatpush1.bf16.msra.mxu0 0
  %1234 = vmatprep.subr.bf16.mxu0 0
  %1235 = vmatpush1.bf16.msra.mxu0 0
  %1236 = vmatprep.subr.bf16.mxu0 0
  %1237 = vmatpush1.bf16.msra.mxu0 0
  %1238 = vmatprep.subr.bf16.mxu0 0
  %1239 = vmatpush1.bf16.msra.mxu0 0
  %1240 = vmatprep.mubr.bf16.mxu0 0
  %1241 = vmatmul.mubr.bf16.gmra.mrb[0].mxu0 %v1076
  %v1242 = vpop.f32.mrb[0].mxu0
  %v1243 = vadd.f32 0.0, %v1242
  %v1244 = vpop.f32.mrb[0].mxu0
  %v1245 = vpop.f32.mrb[0].mxu0
  %v1246 = vpop.f32.mrb[0].mxu0
  %1247 = vdwg.mxu0
  %1248 = vmatprep.subr.bf16.mxu0 0
  %1249 = vmatpush1.bf16.msra.mxu0 %v600
  %1250 = vmatprep.subr.bf16.mxu0 0
  %1251 = vmatpush1.bf16.msra.mxu0 %v601
  %1252 = vmatprep.subr.bf16.mxu0 0
  %1253 = vmatpush1.bf16.msra.mxu0 %v602
  %1254 = vmatprep.subr.bf16.mxu0 0
  %1255 = vmatpush1.bf16.msra.mxu0 %v603
  %1256 = vmatprep.subr.bf16.mxu0 0
  %1257 = vmatpush1.bf16.msra.mxu0 %v604
  %1258 = vmatprep.subr.bf16.mxu0 0
  %1259 = vmatpush1.bf16.msra.mxu0 %v605
  %1260 = vmatprep.subr.bf16.mxu0 0
  %1261 = vmatpush1.bf16.msra.mxu0 %v606
  %1262 = vmatprep.subr.bf16.mxu0 0
  %1263 = vmatpush1.bf16.msra.mxu0 %v607
  %1264 = vmatprep.subr.bf16.mxu0 0
  %1265 = vmatpush1.bf16.msra.mxu0 0
  %1266 = vmatprep.subr.bf16.mxu0 0
  %1267 = vmatpush1.bf16.msra.mxu0 0
  %1268 = vmatprep.subr.bf16.mxu0 0
  %1269 = vmatpush1.bf16.msra.mxu0 0
  %1270 = vmatprep.subr.bf16.mxu0 0
  %1271 = vmatpush1.bf16.msra.mxu0 0
  %1272 = vmatprep.subr.bf16.mxu0 0
  %1273 = vmatpush1.bf16.msra.mxu0 0
  %1274 = vmatprep.subr.bf16.mxu0 0
  %1275 = vmatpush1.bf16.msra.mxu0 0
  %1276 = vmatprep.subr.bf16.mxu0 0
  %1277 = vmatpush1.bf16.msra.mxu0 0
  %1278 = vmatprep.subr.bf16.mxu0 0
  %1279 = vmatpush1.bf16.msra.mxu0 0
  %1280 = vmatprep.mubr.bf16.mxu0 0
  %1281 = vmatmul.mubr.bf16.gmra.mrb[0].mxu0 %v1077
  %v1282 = vpop.f32.mrb[0].mxu0
  %v1283 = vadd.f32 0.0, %v1282
  %v1284 = vpop.f32.mrb[0].mxu0
  %v1285 = vpop.f32.mrb[0].mxu0
  %v1286 = vpop.f32.mrb[0].mxu0
  %1287 = vdwg.mxu0
  %1288 = vmatprep.subr.bf16.mxu0 0
  %1289 = vmatpush1.bf16.msra.mxu0 %v694
  %1290 = vmatprep.subr.bf16.mxu0 0
  %1291 = vmatpush1.bf16.msra.mxu0 %v695
  %1292 = vmatprep.subr.bf16.mxu0 0
  %1293 = vmatpush1.bf16.msra.mxu0 %v696
  %1294 = vmatprep.subr.bf16.mxu0 0
  %1295 = vmatpush1.bf16.msra.mxu0 %v697
  %1296 = vmatprep.subr.bf16.mxu0 0
  %1297 = vmatpush1.bf16.msra.mxu0 %v698
  %1298 = vmatprep.subr.bf16.mxu0 0
  %1299 = vmatpush1.bf16.msra.mxu0 %v699
  %1300 = vmatprep.subr.bf16.mxu0 0
  %1301 = vmatpush1.bf16.msra.mxu0 %v700
  %1302 = vmatprep.subr.bf16.mxu0 0
  %1303 = vmatpush1.bf16.msra.mxu0 %v701
  %1304 = vmatprep.subr.bf16.mxu0 0
  %1305 = vmatpush1.bf16.msra.mxu0 0
  %1306 = vmatprep.subr.bf16.mxu0 0
  %1307 = vmatpush1.bf16.msra.mxu0 0
  %1308 = vmatprep.subr.bf16.mxu0 0
  %1309 = vmatpush1.bf16.msra.mxu0 0
  %1310 = vmatprep.subr.bf16.mxu0 0
  %1311 = vmatpush1.bf16.msra.mxu0 0
  %1312 = vmatprep.subr.bf16.mxu0 0
  %1313 = vmatpush1.bf16.msra.mxu0 0
  %1314 = vmatprep.subr.bf16.mxu0 0
  %1315 = vmatpush1.bf16.msra.mxu0 0
  %1316 = vmatprep.subr.bf16.mxu0 0
  %1317 = vmatpush1.bf16.msra.mxu0 0
  %1318 = vmatprep.subr.bf16.mxu0 0
  %1319 = vmatpush1.bf16.msra.mxu0 0
  %1320 = vmatprep.mubr.bf16.mxu0 0
  %1321 = vmatmul.mubr.bf16.gmra.mrb[0].mxu0 %v1078
  %v1322 = vpop.f32.mrb[0].mxu0
  %v1323 = vadd.f32 0.0, %v1322
  %v1324 = vpop.f32.mrb[0].mxu0
  %v1325 = vpop.f32.mrb[0].mxu0
  %v1326 = vpop.f32.mrb[0].mxu0
  %1327 = vdwg.mxu0
  %1328 = vmatprep.subr.bf16.mxu0 0
  %1329 = vmatpush1.bf16.msra.mxu0 %v788
  %1330 = vmatprep.subr.bf16.mxu0 0
  %1331 = vmatpush1.bf16.msra.mxu0 %v789
  %1332 = vmatprep.subr.bf16.mxu0 0
  %1333 = vmatpush1.bf16.msra.mxu0 %v790
  %1334 = vmatprep.subr.bf16.mxu0 0
  %1335 = vmatpush1.bf16.msra.mxu0 %v791
  %1336 = vmatprep.subr.bf16.mxu0 0
  %1337 = vmatpush1.bf16.msra.mxu0 %v792
  %1338 = vmatprep.subr.bf16.mxu0 0
  %1339 = vmatpush1.bf16.msra.mxu0 %v793
  %1340 = vmatprep.subr.bf16.mxu0 0
  %1341 = vmatpush1.bf16.msra.mxu0 %v794
  %1342 = vmatprep.subr.bf16.mxu0 0
  %1343 = vmatpush1.bf16.msra.mxu0 %v795
  %1344 = vmatprep.subr.bf16.mxu0 0
  %1345 = vmatpush1.bf16.msra.mxu0 0
  %1346 = vmatprep.subr.bf16.mxu0 0
  %1347 = vmatpush1.bf16.msra.mxu0 0
  %1348 = vmatprep.subr.bf16.mxu0 0
  %1349 = vmatpush1.bf16.msra.mxu0 0
  %1350 = vmatprep.subr.bf16.mxu0 0
  %1351 = vmatpush1.bf16.msra.mxu0 0
  %1352 = vmatprep.subr.bf16.mxu0 0
  %1353 = vmatpush1.bf16.msra.mxu0 0
  %1354 = vmatprep.subr.bf16.mxu0 0
  %1355 = vmatpush1.bf16.msra.mxu0 0
  %1356 = vmatprep.subr.bf16.mxu0 0
  %1357 = vmatpush1.bf16.msra.mxu0 0
  %1358 = vmatprep.subr.bf16.mxu0 0
  %1359 = vmatpush1.bf16.msra.mxu0 0
  %1360 = vmatprep.mubr.bf16.mxu0 0
  %1361 = vmatmul.mubr.bf16.gmra.mrb[0].mxu0 %v1079
  %v1362 = vpop.f32.mrb[0].mxu0
  %v1363 = vadd.f32 0.0, %v1362
  %v1364 = vpop.f32.mrb[0].mxu0
  %v1365 = vpop.f32.mrb[0].mxu0
  %v1366 = vpop.f32.mrb[0].mxu0
  %1367 = vdwg.mxu0
  %1368 = vmatprep.subr.bf16.mxu0 0
  %1369 = vmatpush1.bf16.msra.mxu0 %v882
  %1370 = vmatprep.subr.bf16.mxu0 0
  %1371 = vmatpush1.bf16.msra.mxu0 %v883
  %1372 = vmatprep.subr.bf16.mxu0 0
  %1373 = vmatpush1.bf16.msra.mxu0 %v884
  %1374 = vmatprep.subr.bf16.mxu0 0
  %1375 = vmatpush1.bf16.msra.mxu0 %v885
  %1376 = vmatprep.subr.bf16.mxu0 0
  %1377 = vmatpush1.bf16.msra.mxu0 %v886
  %1378 = vmatprep.subr.bf16.mxu0 0
  %1379 = vmatpush1.bf16.msra.mxu0 %v887
  %1380 = vmatprep.subr.bf16.mxu0 0
  %1381 = vmatpush1.bf16.msra.mxu0 %v888
  %1382 = vmatprep.subr.bf16.mxu0 0
  %1383 = vmatpush1.bf16.msra.mxu0 %v889
  %1384 = vmatprep.subr.bf16.mxu0 0
  %1385 = vmatpush1.bf16.msra.mxu0 0
  %1386 = vmatprep.subr.bf16.mxu0 0
  %1387 = vmatpush1.bf16.msra.mxu0 0
  %1388 = vmatprep.subr.bf16.mxu0 0
  %1389 = vmatpush1.bf16.msra.mxu0 0
  %1390 = vmatprep.subr.bf16.mxu0 0
  %1391 = vmatpush1.bf16.msra.mxu0 0
  %1392 = vmatprep.subr.bf16.mxu0 0
  %1393 = vmatpush1.bf16.msra.mxu0 0
  %1394 = vmatprep.subr.bf16.mxu0 0
  %1395 = vmatpush1.bf16.msra.mxu0 0
  %1396 = vmatprep.subr.bf16.mxu0 0
  %1397 = vmatpush1.bf16.msra.mxu0 0
  %1398 = vmatprep.subr.bf16.mxu0 0
  %1399 = vmatpush1.bf16.msra.mxu0 0
  %1400 = vmatprep.mubr.bf16.mxu0 0
  %1401 = vmatmul.mubr.bf16.gmra.mrb[0].mxu0 %v1080
  %v1402 = vpop.f32.mrb[0].mxu0
  %v1403 = vadd.f32 0.0, %v1402
  %v1404 = vpop.f32.mrb[0].mxu0
  %v1405 = vpop.f32.mrb[0].mxu0
  %v1406 = vpop.f32.mrb[0].mxu0
  %1407 = vdwg.mxu0
  %v1416 = vrot.slane %v1163, 7
  %v1417 = vsel %vm948, %v1416, %v1123
  %v1418 = vrot.slane %v1203, 6
  %v1419 = vsel %vm951, %v1418, %v1417
  %v1420 = vrot.slane %v1243, 5
  %v1421 = vsel %vm954, %v1420, %v1419
  %v1422 = vrot.slane %v1283, 4
  %v1423 = vsel %vm957, %v1422, %v1421
  %v1424 = vrot.slane %v1323, 3
  %v1425 = vsel %vm960, %v1424, %v1423
  %v1426 = vrot.slane %v1363, 2
  %v1427 = vsel %vm963, %v1426, %v1425
  %v1428 = vrot.slane %v1403, 1
  %v1429 = vsel %vm966, %v1428, %v1427
  %v1431 = vadd.f32 %v1087, %v1429
  %1432 = vst [vmem:[#allocation4] sm:$0xff] %v1431
  %1433 = vst.msk [vmem:[#allocation2] sm:$0xff] %vm1046, %v971
  // Predicated region
  $region18: #{decoder_forward.2} parent=0 // pred_check
    %p1434 = pneg %p15
  $region19: #{decoder_forward.2} parent=0 // pred_check_branch
    %1436 = sbr.rel (%p1434) target = $region21
  $region20: #{decoder_forward.2} parent=0 // pred_region
    %v1437 = vld [vmem:[#allocation4] sm:$0xff]
    %v1438 = vld [vmem:[#allocation3] sm:$0xff]
    %v1439 = vrcp.pop %v1438
    %1441 = vset.pattern.permute.xlu0 0
    %1442 = vperm.xlu0 %1441, %v1439
    %v1443 = vpop.permute.xlu0 %1442
    %v1445 = vmul.f32 %v1437, %v1443
    %1446 = vst [vmem:[%s3] sm:$0xff] %v1445
  $region21: #{decoder_forward.2} parent=0 // pred_fallthru
    _
  // Predicated region
  $region22: #{decoder_forward.2} parent=0 // pred_check
    _
  $region23: #{decoder_forward.2} parent=0 // pred_check_branch
    %1448 = sbr.rel (0) target = $region25
  $region24: #{decoder_forward.2} parent=0 // pred_region
    _
  $region25: #{decoder_forward.2} parent=0 // pred_fallthru
    _
  // Predicated region
  $region26: #{decoder_forward.2} parent=0 // pred_check
    _
  $region27: #{decoder_forward.2} parent=0 // pred_check_branch
    %1450 = sbr.rel (0) target = $region29
  $region28: #{decoder_forward.2} parent=0 // pred_region
    _
  $region29: #{decoder_forward.2} parent=0 // pred_fallthru
    _

// kernel: decoder_forward.3
$region0: #{decoder_forward.3}
  #allocation0 [shape = 'u32[]', space=smem, size = 0x4, offset = 0x4, fixed_abs, tag = 'smem constant byte address 0x4 - core index']
  #allocation1 [shape = 'u32[144,128]{1,0:T(1,128)}', space=vmem, size = 0x12000, scoped, tag = 'internal scratch']
  #allocation2 [shape = 'f32[8,128]{1,0:T(8,128)}', space=vmem, size = 0x1000, scoped, tag = 'scratch operand']
  #allocation3 [shape = 'f32[8,384]{1,0:T(8,128)}', space=vmem, size = 0x3000, scoped, tag = 'scratch operand']
  %s0 = inlined_call_operand.vmem [shape: bf16[8,256], index: 0, kind: input, shape index: {}]
  %s1 = inlined_call_operand.vmem [shape: f32[2,8,128], index: 1, kind: input, shape index: {}]
  %s2 = inlined_call_operand.vmem [shape: bf16[256,384], index: 2, kind: input, shape index: {}]
  %s3 = inlined_call_operand.vmem [shape: bf16[1,128,384], index: 3, kind: input, shape index: {}]
  %s4 = inlined_call_operand.vmem [shape: bf16[2,128,384], index: 4, kind: input, shape index: {}]
  %s5 = inlined_call_operand.vmem [shape: f32[2,1,384], index: 5, kind: input, shape index: {}]
  %s6 = inlined_call_operand.vmem [shape: f32[2,1,128], index: 6, kind: input, shape index: {}]
  %s7 = inlined_call_operand.hbm [shape: f32[8,128], index: 7, kind: output, shape index: {0}]
  %s8 = inlined_call_operand.hbm [shape: f32[2,8,128], index: 8, kind: output, shape index: {1}]
  %9 = xla_tuple %s7, %s8
  %s10 = sld [smem:[#allocation0]]
  $region81: #{decoder_forward.3} parent=0
    _
  %s12 = ssub.s32 1, %s10
  %s13 = scalar_select 0, %s12, %s10
  $region1: #{decoder_forward.3} parent=0
    #allocation4 [shape = 'u8[4096]{0}', space=vmem, size = 0x1000, scoped, tag = 'output window, operand 0, single buffered']
    #allocation5 [shape = 's32[2]{0}', space=sflag, size = 0x8, scoped, tag = 'scoped memory for decoder_forward.3']
    #allocation6 [shape = 'u8[8192]{0}', space=vmem, size = 0x2000, scoped, tag = 'output window, operand 1']
    #allocation7 [shape = 's32[2]{0}', space=sflag, size = 0x8, scoped, tag = 'scoped memory for decoder_forward.3']
    %14 = vsyncpa [#allocation5], 0
    %15 = vsyncpa [#allocation7], 0
    %s16 = scalar_lea.sflag [#allocation7], 1
    %17 = vsyncpa %s16, 0
    loop: start=0, step=1, limit=4
    $region2: #{decoder_forward.3} parent=1 // loop_pre_header
      _
    $region3: #{decoder_forward.3} parent=1 // loop_header
      %s19 = sphi 0, %s23
      %p20 = scmp.ge.s32.totalorder %s19, 4
      %s27 = sphi 0, %s27
      %s29 = sphi 0, %s27
      %s30 = sphi 0, %s29
      %s44 = sphi 0, %s30
      %s50 = sphi 0, %s52
      %s53 = sphi 0, %s50
      %s54 = sphi 0, %s53
      %s70 = sphi 0, %s54
      %s74 = sphi 0, %s74
      %s76 = sphi 0, %s74
      %s77 = sphi 0, %s76
      %s91 = sphi 0, %s77
      %s103 = sphi 0, %s105
      %s106 = sphi 0, %s103
      %s107 = sphi 0, %s106
      %s123 = sphi 0, %s107
      %s129 = sphi 0, %s131
      %s132 = sphi 0, %s129
      %s133 = sphi 0, %s132
      %s149 = sphi 0, %s133
      %s155 = sphi 0, %s157
      %s158 = sphi 0, %s155
      %s159 = sphi 0, %s158
      %s175 = sphi 0, %s159
      %s181 = sphi 0, %s183
      %s184 = sphi 0, %s181
      %s185 = sphi 0, %s184
      %s201 = sphi 0, %s185
      %s205 = sphi 0, %s205
      %s207 = sphi 0, %s205
      %s208 = sphi 0, %s207
      %s222 = sphi 0, %s208
      %s228 = sphi 0, %s230
      %s231 = sphi 0, %s228
      %s232 = sphi 0, %s231
      %s248 = sphi 0, %s232
    $region4: #{decoder_forward.3} parent=1 // loop_header_branch
      %22 = sbr.rel (%p20) target = $region8
    $region5: #{decoder_forward.3} parent=1 // loop_body
      %s24 = ssub.s32 %s19, 1
      %s25 = ssub.s32 %s19, 2
      %s26 = sadd.s32 %s19, 1
      %s28 = sadd.s32 %s27, 1
      %p31 = scmp.eq.s32.totalorder %s19, 1
      %p32 = scmp.ne.s32.totalorder %s27, %s29
      %p33 = scmp.eq.s32.totalorder %s19, 0
      %p34 = por %p32, %p33
      %p35 = scmp.ne.s32.totalorder %s27, %s29
      %p36 = scmp.eq.s32.totalorder %s24, 1
      %p37 = por %p35, %p36
      %p38 = scmp.ne.s32.totalorder %s29, %s30
      %p39 = scmp.eq.s32.totalorder %s24, 0
      %p40 = por %p38, %p39
      %p41 = scmp.ne.s32.totalorder %s29, %s30
      %p42 = scmp.eq.s32.totalorder %s25, 1
      %p43 = por %p41, %p42
      %p45 = scmp.ne.s32.totalorder %s30, %s44
      %p46 = scmp.eq.s32.totalorder %s25, 0
      %p47 = por %p45, %p46
      %s48 = ssub.s32 %s19, %s26
      %p49 = scmp.eq.s32.totalorder %s48, 0
      %s51 = sadd.s32 %s50, 1
      %s52 = scalar_select %p49, %s50, %s51
      %p55 = pneg %p49
      %p56 = scmp.eq.s32.totalorder %s19, 1
      %p57 = por %p55, %p56
      %p58 = scmp.ne.s32.totalorder %s50, %s53
      %p59 = scmp.eq.s32.totalorder %s19, 0
      %p60 = por %p58, %p59
      %p61 = scmp.ne.s32.totalorder %s50, %s53
      %p62 = scmp.eq.s32.totalorder %s24, 1
      %p63 = por %p61, %p62
      %p64 = scmp.ne.s32.totalorder %s53, %s54
      %p65 = scmp.eq.s32.totalorder %s24, 0
      %p66 = por %p64, %p65
      %p67 = scmp.ne.s32.totalorder %s53, %s54
      %p68 = scmp.eq.s32.totalorder %s25, 1
      %p69 = por %p67, %p68
      %p71 = scmp.ne.s32.totalorder %s54, %s70
      %p72 = scmp.eq.s32.totalorder %s25, 0
      %p73 = por %p71, %p72
      %s75 = sadd.s32 %s74, 1
      %p78 = scmp.eq.s32.totalorder %s19, 1
      %p79 = scmp.ne.s32.totalorder %s74, %s76
      %p80 = scmp.eq.s32.totalorder %s19, 0
      %p81 = por %p79, %p80
      %p82 = scmp.ne.s32.totalorder %s74, %s76
      %p83 = scmp.eq.s32.totalorder %s24, 1
      %p84 = por %p82, %p83
      %p85 = scmp.ne.s32.totalorder %s76, %s77
      %p86 = scmp.eq.s32.totalorder %s24, 0
      %p87 = por %p85, %p86
      %p88 = scmp.ne.s32.totalorder %s76, %s77
      %p89 = scmp.eq.s32.totalorder %s25, 1
      %p90 = por %p88, %p89
      %p92 = scmp.ne.s32.totalorder %s77, %s91
      %p93 = scmp.eq.s32.totalorder %s25, 0
      %p94 = por %p92, %p93
      %s95 = ssub.s32 %s19, 1
      %p96 = scmp.gt.s32.totalorder %s95, 0
      %s97 = scalar_select %p96, %s95, 0
      %s98 = ssub.s32 %s26, 1
      %p99 = scmp.gt.s32.totalorder %s98, 0
      %s100 = scalar_select %p99, %s98, 0
      %s101 = ssub.s32 %s97, %s100
      %p102 = scmp.eq.s32.totalorder %s101, 0
      %s104 = sadd.s32 %s103, 1
      %s105 = scalar_select %p102, %s103, %s104
      %p108 = pneg %p102
      %p109 = scmp.eq.s32.totalorder %s19, 1
      %p110 = por %p108, %p109
      %p111 = scmp.ne.s32.totalorder %s103, %s106
      %p112 = scmp.eq.s32.totalorder %s19, 0
      %p113 = por %p111, %p112
      %p114 = scmp.ne.s32.totalorder %s103, %s106
      %p115 = scmp.eq.s32.totalorder %s24, 1
      %p116 = por %p114, %p115
      %p117 = scmp.ne.s32.totalorder %s106, %s107
      %p118 = scmp.eq.s32.totalorder %s24, 0
      %p119 = por %p117, %p118
      %p120 = scmp.ne.s32.totalorder %s106, %s107
      %p121 = scmp.eq.s32.totalorder %s25, 1
      %p122 = por %p120, %p121
      %p124 = scmp.ne.s32.totalorder %s107, %s123
      %p125 = scmp.eq.s32.totalorder %s25, 0
      %p126 = por %p124, %p125
      %s127 = ssub.s32 %s19, %s26
      %p128 = scmp.eq.s32.totalorder %s127, 0
      %s130 = sadd.s32 %s129, 1
      %s131 = scalar_select %p128, %s129, %s130
      %p134 = pneg %p128
      %p135 = scmp.eq.s32.totalorder %s19, 1
      %p136 = por %p134, %p135
      %p137 = scmp.ne.s32.totalorder %s129, %s132
      %p138 = scmp.eq.s32.totalorder %s19, 0
      %p139 = por %p137, %p138
      %p140 = scmp.ne.s32.totalorder %s129, %s132
      %p141 = scmp.eq.s32.totalorder %s24, 1
      %p142 = por %p140, %p141
      %p143 = scmp.ne.s32.totalorder %s132, %s133
      %p144 = scmp.eq.s32.totalorder %s24, 0
      %p145 = por %p143, %p144
      %p146 = scmp.ne.s32.totalorder %s132, %s133
      %p147 = scmp.eq.s32.totalorder %s25, 1
      %p148 = por %p146, %p147
      %p150 = scmp.ne.s32.totalorder %s133, %s149
      %p151 = scmp.eq.s32.totalorder %s25, 0
      %p152 = por %p150, %p151
      %s153 = ssub.s32 %s19, %s26
      %p154 = scmp.eq.s32.totalorder %s153, 0
      %s156 = sadd.s32 %s155, 1
      %s157 = scalar_select %p154, %s155, %s156
      %p160 = pneg %p154
      %p161 = scmp.eq.s32.totalorder %s19, 1
      %p162 = por %p160, %p161
      %p163 = scmp.ne.s32.totalorder %s155, %s158
      %p164 = scmp.eq.s32.totalorder %s19, 0
      %p165 = por %p163, %p164
      %p166 = scmp.ne.s32.totalorder %s155, %s158
      %p167 = scmp.eq.s32.totalorder %s24, 1
      %p168 = por %p166, %p167
      %p169 = scmp.ne.s32.totalorder %s158, %s159
      %p170 = scmp.eq.s32.totalorder %s24, 0
      %p171 = por %p169, %p170
      %p172 = scmp.ne.s32.totalorder %s158, %s159
      %p173 = scmp.eq.s32.totalorder %s25, 1
      %p174 = por %p172, %p173
      %p176 = scmp.ne.s32.totalorder %s159, %s175
      %p177 = scmp.eq.s32.totalorder %s25, 0
      %p178 = por %p176, %p177
      %s179 = ssub.s32 %s19, %s26
      %p180 = scmp.eq.s32.totalorder %s179, 0
      %s182 = sadd.s32 %s181, 1
      %s183 = scalar_select %p180, %s181, %s182
      %p186 = pneg %p180
      %p187 = scmp.eq.s32.totalorder %s19, 1
      %p188 = por %p186, %p187
      %p189 = scmp.ne.s32.totalorder %s181, %s184
      %p190 = scmp.eq.s32.totalorder %s19, 0
      %p191 = por %p189, %p190
      %p192 = scmp.ne.s32.totalorder %s181, %s184
      %p193 = scmp.eq.s32.totalorder %s24, 1
      %p194 = por %p192, %p193
      %p195 = scmp.ne.s32.totalorder %s184, %s185
      %p196 = scmp.eq.s32.totalorder %s24, 0
      %p197 = por %p195, %p196
      %p198 = scmp.ne.s32.totalorder %s184, %s185
      %p199 = scmp.eq.s32.totalorder %s25, 1
      %p200 = por %p198, %p199
      %p202 = scmp.ne.s32.totalorder %s185, %s201
      %p203 = scmp.eq.s32.totalorder %s25, 0
      %p204 = por %p202, %p203
      %s206 = sadd.s32 %s205, 1
      %p209 = scmp.eq.s32.totalorder %s19, 1
      %p210 = scmp.ne.s32.totalorder %s205, %s207
      %p211 = scmp.eq.s32.totalorder %s19, 0
      %p212 = por %p210, %p211
      %p213 = scmp.ne.s32.totalorder %s205, %s207
      %p214 = scmp.eq.s32.totalorder %s24, 1
      %p215 = por %p213, %p214
      %p216 = scmp.ne.s32.totalorder %s207, %s208
      %p217 = scmp.eq.s32.totalorder %s24, 0
      %p218 = por %p216, %p217
      %p219 = scmp.ne.s32.totalorder %s207, %s208
      %p220 = scmp.eq.s32.totalorder %s25, 1
      %p221 = por %p219, %p220
      %p223 = scmp.ne.s32.totalorder %s208, %s222
      %p224 = scmp.eq.s32.totalorder %s25, 0
      %p225 = por %p223, %p224
      %s226 = ssub.s32 %s19, %s26
      %p227 = scmp.eq.s32.totalorder %s226, 0
      %s229 = sadd.s32 %s228, 1
      %s230 = scalar_select %p227, %s228, %s229
      %p233 = pneg %p227
      %p234 = scmp.eq.s32.totalorder %s19, 1
      %p235 = por %p233, %p234
      %p236 = scmp.ne.s32.totalorder %s228, %s231
      %p237 = scmp.eq.s32.totalorder %s19, 0
      %p238 = por %p236, %p237
      %p239 = scmp.ne.s32.totalorder %s228, %s231
      %p240 = scmp.eq.s32.totalorder %s24, 1
      %p241 = por %p239, %p240
      %p242 = scmp.ne.s32.totalorder %s231, %s232
      %p243 = scmp.eq.s32.totalorder %s24, 0
      %p244 = por %p242, %p243
      %p245 = scmp.ne.s32.totalorder %s231, %s232
      %p246 = scmp.eq.s32.totalorder %s25, 1
      %p247 = por %p245, %p246
      %p249 = scmp.ne.s32.totalorder %s232, %s248
      %p250 = scmp.eq.s32.totalorder %s25, 0
      %p251 = por %p249, %p250
      %p252 = scmp.le.s32.totalorder 1, %s19
      %p253 = scmp.lt.s32.totalorder %s19, 3
      %p254 = pnand %p252, %p253
      %p255 = pneg %p254
      // Predicated region
      $region9: #{decoder_forward.3} parent=5 // pred_check
        _
      $region10: #{decoder_forward.3} parent=5 // pred_check_branch
        %257 = sbr.rel (%p254) target = $region12
      $region11: #{decoder_forward.3} parent=5 // pred_region
        %s258 = ssub.s32 %s19, 1
        // Predicated region
        $region13: #{decoder_forward.3} parent=11 // pred_check
          %p259 = pneg %p40
        $region14: #{decoder_forward.3} parent=11 // pred_check_branch
          %261 = sbr.rel (%p259) target = $region16
        $region15: #{decoder_forward.3} parent=11 // pred_region
          _
        $region16: #{decoder_forward.3} parent=11 // pred_fallthru
          _
        // Predicated region
        $region17: #{decoder_forward.3} parent=11 // pred_check
          %p262 = pneg %p87
        $region18: #{decoder_forward.3} parent=11 // pred_check_branch
          %264 = sbr.rel (%p262) target = $region20
        $region19: #{decoder_forward.3} parent=11 // pred_region
          _
        $region20: #{decoder_forward.3} parent=11 // pred_fallthru
          _
      $region12: #{decoder_forward.3} parent=5 // pred_fallthru
        _
      %p265 = scmp.lt.s32.totalorder %s19, 2
      // Predicated region
      $region21: #{decoder_forward.3} parent=5 // pred_check
        %p266 = pneg %p265
      $region22: #{decoder_forward.3} parent=5 // pred_check_branch
        %268 = sbr.rel (%p266) target = $region24
      $region23: #{decoder_forward.3} parent=5 // pred_region
        // Predicated region
        $region25: #{decoder_forward.3} parent=23 // pred_check
          %p269 = pneg %p60
        $region26: #{decoder_forward.3} parent=23 // pred_check_branch
          %271 = sbr.rel (%p269) target = $region28
        $region27: #{decoder_forward.3} parent=23 // pred_region
          %p272 = scmp.lt.s32.totalorder %s19, 1
          %s273 = scalar_select %p272, %s19, 1
          %s274 = smul.addr %s273, 8
          %s275 = scalar_lea.vmem %s1, %s274
        $region28: #{decoder_forward.3} parent=23 // pred_fallthru
          _
        // Predicated region
        $region29: #{decoder_forward.3} parent=23 // pred_check
          %p276 = pneg %p113
        $region30: #{decoder_forward.3} parent=23 // pred_check_branch
          %278 = sbr.rel (%p276) target = $region32
        $region31: #{decoder_forward.3} parent=23 // pred_region
          %s279 = ssub.s32 %s19, 1
          %p280 = scmp.gt.s32.totalorder %s279, 0
          %s281 = scalar_select %p280, %s279, 0
          %p282 = scmp.lt.s32.totalorder %s281, 0
          %s283 = scalar_select %p282, %s281, 0
          %s284 = smul.addr %s283, 48
          %s285 = smul.addr %s284, 4
          %s286 = scalar_lea.vmem %s3, %s285
          %s287 = ssub.s32 %s19, 1
          %p288 = scmp.gt.s32.totalorder %s287, 0
          %s289 = scalar_select %p288, %s287, 0
        $region32: #{decoder_forward.3} parent=23 // pred_fallthru
          _
        // Predicated region
        $region33: #{decoder_forward.3} parent=23 // pred_check
          %p290 = pneg %p139
        $region34: #{decoder_forward.3} parent=23 // pred_check_branch
          %292 = sbr.rel (%p290) target = $region36
        $region35: #{decoder_forward.3} parent=23 // pred_region
          %p293 = scmp.lt.s32.totalorder %s19, 1
          %s294 = scalar_select %p293, %s19, 1
          %s295 = smul.addr %s294, 48
          %s296 = smul.addr %s295, 4
          %s297 = scalar_lea.vmem %s4, %s296
        $region36: #{decoder_forward.3} parent=23 // pred_fallthru
          _
        // Predicated region
        $region37: #{decoder_forward.3} parent=23 // pred_check
          %p298 = pneg %p165
        $region38: #{decoder_forward.3} parent=23 // pred_check_branch
          %300 = sbr.rel (%p298) target = $region40
        $region39: #{decoder_forward.3} parent=23 // pred_region
          %p301 = scmp.lt.s32.totalorder %s19, 1
          %s302 = scalar_select %p301, %s19, 1
          %s303 = smul.addr %s302, 3
          %s304 = scalar_lea.vmem %s5, %s303
        $region40: #{decoder_forward.3} parent=23 // pred_fallthru
          _
        // Predicated region
        $region41: #{decoder_forward.3} parent=23 // pred_check
          %p305 = pneg %p191
        $region42: #{decoder_forward.3} parent=23 // pred_check_branch
          %307 = sbr.rel (%p305) target = $region44
        $region43: #{decoder_forward.3} parent=23 // pred_region
          %p308 = scmp.lt.s32.totalorder %s19, 1
          %s309 = scalar_select %p308, %s19, 1
          %s310 = scalar_lea.vmem %s6, %s309
        $region44: #{decoder_forward.3} parent=23 // pred_fallthru
          _
      $region24: #{decoder_forward.3} parent=5 // pred_fallthru
        _
      %p311 = scmp.le.s32.totalorder 1, %s19
      %p312 = scmp.lt.s32.totalorder %s19, 3
      %p313 = pnand %p311, %p312
      %p314 = pneg %p313
      // Predicated region
      $region45: #{decoder_forward.3} parent=5 // pred_check
        _
      $region46: #{decoder_forward.3} parent=5 // pred_check_branch
        %316 = sbr.rel (%p313) target = $region48
      $region47: #{decoder_forward.3} parent=5 // pred_region
        %s317 = ssub.s32 %s19, 1
        %p318 = pneg %p40
        %p319 = pneg %p37
        %p320 = scmp.lt.s32.totalorder %s24, 1
        %s321 = scalar_select %p320, %s24, 1
        %s322 = smul.addr %s321, 8
        %s323 = scalar_lea.vmem %s1, %s322
        %p324 = pneg %p66
        %p325 = pneg %p63
        %p326 = pneg %p87
        %p327 = pneg %p84
        %s328 = ssub.s32 %s24, 1
        %p329 = scmp.gt.s32.totalorder %s328, 0
        %s330 = scalar_select %p329, %s328, 0
        %p331 = scmp.lt.s32.totalorder %s330, 0
        %s332 = scalar_select %p331, %s330, 0
        %s333 = smul.addr %s332, 48
        %s334 = smul.addr %s333, 4
        %s335 = scalar_lea.vmem %s3, %s334
        %p336 = pneg %p119
        %p337 = pneg %p116
        %p338 = scmp.lt.s32.totalorder %s24, 1
        %s339 = scalar_select %p338, %s24, 1
        %s340 = smul.addr %s339, 48
        %s341 = smul.addr %s340, 4
        %s342 = scalar_lea.vmem %s4, %s341
        %p343 = pneg %p145
        %p344 = pneg %p142
        %p345 = scmp.lt.s32.totalorder %s24, 1
        %s346 = scalar_select %p345, %s24, 1
        %s347 = smul.addr %s346, 3
        %s348 = scalar_lea.vmem %s5, %s347
        %p349 = pneg %p171
        %p350 = pneg %p168
        %p351 = scmp.lt.s32.totalorder %s24, 1
        %s352 = scalar_select %p351, %s24, 1
        %s353 = scalar_lea.vmem %s6, %s352
        %p354 = pneg %p197
        %p355 = pneg %p194
        %p356 = pneg %p218
        %p357 = pneg %p215
        %p358 = pneg %p244
        %p359 = pneg %p241
        %s360 = sand.u32 %s231, 1
        %s361 = scalar_lea.sflag [#allocation7], %s360
        %s362 = sand.u32 %s231, 1
        %s363 = smul.addr %s362, 8
        %s364 = scalar_lea.vmem [#allocation6], %s363
        %p365 = scmp.lt.s32.totalorder %s24, 1
        %s366 = scalar_select %p365, %s24, 1
        %s367 = smul.addr %s366, 8
        %s368 = scalar_lea.vmem %s1, %s367
        %s369 = ssub.s32 %s24, 1
        %p370 = scmp.gt.s32.totalorder %s369, 0
        %s371 = scalar_select %p370, %s369, 0
        %p372 = scmp.lt.s32.totalorder %s371, 0
        %s373 = scalar_select %p372, %s371, 0
        %s374 = smul.addr %s373, 48
        %s375 = smul.addr %s374, 4
        %s376 = scalar_lea.vmem %s3, %s375
        %s377 = ssub.s32 %s24, 1
        %p378 = scmp.gt.s32.totalorder %s377, 0
        %s379 = scalar_select %p378, %s377, 0
        %p380 = scmp.lt.s32.totalorder %s24, 1
        %s381 = scalar_select %p380, %s24, 1
        %s382 = smul.addr %s381, 48
        %s383 = smul.addr %s382, 4
        %s384 = scalar_lea.vmem %s4, %s383
        %p385 = scmp.lt.s32.totalorder %s24, 1
        %s386 = scalar_select %p385, %s24, 1
        %s387 = smul.addr %s386, 3
        %s388 = scalar_lea.vmem %s5, %s387
        %p389 = scmp.lt.s32.totalorder %s24, 1
        %s390 = scalar_select %p389, %s24, 1
        %s391 = scalar_lea.vmem %s6, %s390
        %p393 = scmp.eq.s32.totalorder %s24, 0
        // Predicated region
        $region49: #{decoder_forward.3} parent=47 // pred_check
          %p394 = pneg %p393
        $region50: #{decoder_forward.3} parent=47 // pred_check_branch
          %396 = sbr.rel (%p394) target = $region52
        $region51: #{decoder_forward.3} parent=47 // pred_region
          %v397 = vld [vmem:[%s0] sm:$0xff]
          %v398 = vld [vmem:[%s2] sm:$0xff]
          %v399 = vld [vmem:[%s2 + $0x8] sm:$0xf]
          %v400 = vld [vmem:[%s2 + $0xc] sm:$0xff]
          %v401 = vld [vmem:[%s2 + $0x14] sm:$0xf]
          %v402 = vld [vmem:[%s2 + $0x18] sm:$0xff]
          %v403 = vld [vmem:[%s2 + $0x20] sm:$0xf]
          %v404 = vld [vmem:[%s2 + $0x24] sm:$0xff]
          %v405 = vld [vmem:[%s2 + $0x2c] sm:$0xf]
          %v406 = vld [vmem:[%s2 + $0x30] sm:$0xff]
          %v407 = vld [vmem:[%s2 + $0x38] sm:$0xf]
          %v408 = vld [vmem:[%s2 + $0x3c] sm:$0xff]
          %v409 = vld [vmem:[%s2 + $0x44] sm:$0xf]
          %v410 = vld [vmem:[%s2 + $0x48] sm:$0xff]
          %v411 = vld [vmem:[%s2 + $0x50] sm:$0xf]
          %v412 = vld [vmem:[%s2 + $0x54] sm:$0xff]
          %v413 = vld [vmem:[%s2 + $0x5c] sm:$0xf]
          %v414 = vld [vmem:[%s2 + $0x60] sm:$0xff]
          %v415 = vld [vmem:[%s2 + $0x68] sm:$0xf]
          %v416 = vld [vmem:[%s2 + $0x6c] sm:$0xff]
          %v417 = vld [vmem:[%s2 + $0x74] sm:$0xf]
          %v418 = vld [vmem:[%s2 + $0x78] sm:$0xff]
          %v419 = vld [vmem:[%s2 + $0x80] sm:$0xf]
          %v420 = vld [vmem:[%s2 + $0x84] sm:$0xff]
          %v421 = vld [vmem:[%s2 + $0x8c] sm:$0xf]
          %v422 = vld [vmem:[%s2 + $0x90] sm:$0xff]
          %v423 = vld [vmem:[%s2 + $0x98] sm:$0xf]
          %v424 = vld [vmem:[%s2 + $0x9c] sm:$0xff]
          %v425 = vld [vmem:[%s2 + $0xa4] sm:$0xf]
          %v426 = vld [vmem:[%s2 + $0xa8] sm:$0xff]
          %v427 = vld [vmem:[%s2 + $0xb0] sm:$0xf]
          %v428 = vld [vmem:[%s2 + $0xb4] sm:$0xff]
          %v429 = vld [vmem:[%s2 + $0xbc] sm:$0xf]
          %v430 = vld [vmem:[%s2 + $0xc0] sm:$0xff]
          %v431 = vld [vmem:[%s2 + $0xc8] sm:$0xf]
          %v432 = vld [vmem:[%s2 + $0xcc] sm:$0xff]
          %v433 = vld [vmem:[%s2 + $0xd4] sm:$0xf]
          %v434 = vld [vmem:[%s2 + $0xd8] sm:$0xff]
          %v435 = vld [vmem:[%s2 + $0xe0] sm:$0xf]
          %v436 = vld [vmem:[%s2 + $0xe4] sm:$0xff]
          %v437 = vld [vmem:[%s2 + $0xec] sm:$0xf]
          %v438 = vld [vmem:[%s2 + $0xf0] sm:$0xff]
          %v439 = vld [vmem:[%s2 + $0xf8] sm:$0xf]
          %v440 = vld [vmem:[%s2 + $0xfc] sm:$0xff]
          %v441 = vld [vmem:[%s2 + $0x104] sm:$0xf]
          %v442 = vld [vmem:[%s2 + $0x108] sm:$0xff]
          %v443 = vld [vmem:[%s2 + $0x110] sm:$0xf]
          %v444 = vld [vmem:[%s2 + $0x114] sm:$0xff]
          %v445 = vld [vmem:[%s2 + $0x11c] sm:$0xf]
          %v446 = vld [vmem:[%s2 + $0x120] sm:$0xff]
          %v447 = vld [vmem:[%s2 + $0x128] sm:$0xf]
          %v448 = vld [vmem:[%s2 + $0x12c] sm:$0xff]
          %v449 = vld [vmem:[%s2 + $0x134] sm:$0xf]
          %v450 = vld [vmem:[%s2 + $0x138] sm:$0xff]
          %v451 = vld [vmem:[%s2 + $0x140] sm:$0xf]
          %v452 = vld [vmem:[%s2 + $0x144] sm:$0xff]
          %v453 = vld [vmem:[%s2 + $0x14c] sm:$0xf]
          %v454 = vld [vmem:[%s2 + $0x150] sm:$0xff]
          %v455 = vld [vmem:[%s2 + $0x158] sm:$0xf]
          %v456 = vld [vmem:[%s2 + $0x15c] sm:$0xff]
          %v457 = vld [vmem:[%s2 + $0x164] sm:$0xf]
          %v458 = vld [vmem:[%s2 + $0x168] sm:$0xff]
          %v459 = vld [vmem:[%s2 + $0x170] sm:$0xf]
          %v460 = vld [vmem:[%s2 + $0x174] sm:$0xff]
          %v461 = vld [vmem:[%s2 + $0x17c] sm:$0xf]
          %v463 = vunpack.c.l.b16 %v397
          %v464 = vunpack.c.h.b16 %v397
          %v465 = vpack.c.b16 %v463, %v463
          %v466 = vpack.c.b16 %v464, %v464
          %v533 = vunpack.c.l.b16 %v398
          %v534 = vunpack.c.h.b16 %v398
          %v535 = vunpack.c.l.b16 %v399
          %v536 = vunpack.c.l.b16 %v400
          %v537 = vunpack.c.h.b16 %v400
          %v538 = vunpack.c.l.b16 %v401
          %v539 = vunpack.c.l.b16 %v402
          %v540 = vunpack.c.h.b16 %v402
          %v541 = vunpack.c.l.b16 %v403
          %v542 = vunpack.c.l.b16 %v404
          %v543 = vunpack.c.h.b16 %v404
          %v544 = vunpack.c.l.b16 %v405
          %v545 = vunpack.c.l.b16 %v406
          %v546 = vunpack.c.h.b16 %v406
          %v547 = vunpack.c.l.b16 %v407
          %v548 = vunpack.c.l.b16 %v408
          %v549 = vunpack.c.h.b16 %v408
          %v550 = vunpack.c.l.b16 %v409
          %v551 = vunpack.c.l.b16 %v410
          %v552 = vunpack.c.h.b16 %v410
          %v553 = vunpack.c.l.b16 %v411
          %v554 = vunpack.c.l.b16 %v412
          %v555 = vunpack.c.h.b16 %v412
          %v556 = vunpack.c.l.b16 %v413
          %v557 = vunpack.c.l.b16 %v414
          %v558 = vunpack.c.h.b16 %v414
          %v559 = vunpack.c.l.b16 %v415
          %v560 = vunpack.c.l.b16 %v416
          %v561 = vunpack.c.h.b16 %v416
          %v562 = vunpack.c.l.b16 %v417
          %v563 = vunpack.c.l.b16 %v418
          %v564 = vunpack.c.h.b16 %v418
          %v565 = vunpack.c.l.b16 %v419
          %v566 = vunpack.c.l.b16 %v420
          %v567 = vunpack.c.h.b16 %v420
          %v568 = vunpack.c.l.b16 %v421
          %v569 = vunpack.c.l.b16 %v422
          %v570 = vunpack.c.h.b16 %v422
          %v571 = vunpack.c.l.b16 %v423
          %v572 = vunpack.c.l.b16 %v424
          %v573 = vunpack.c.h.b16 %v424
          %v574 = vunpack.c.l.b16 %v425
          %v575 = vunpack.c.l.b16 %v426
          %v576 = vunpack.c.h.b16 %v426
          %v577 = vunpack.c.l.b16 %v427
          %v578 = vunpack.c.l.b16 %v428
          %v579 = vunpack.c.h.b16 %v428
          %v580 = vunpack.c.l.b16 %v429
          %v581 = vunpack.c.l.b16 %v430
          %v582 = vunpack.c.h.b16 %v430
          %v583 = vunpack.c.l.b16 %v431
          %v584 = vunpack.c.l.b16 %v432
          %v585 = vunpack.c.h.b16 %v432
          %v586 = vunpack.c.l.b16 %v433
          %v587 = vunpack.c.l.b16 %v434
          %v588 = vunpack.c.h.b16 %v434
          %v589 = vunpack.c.l.b16 %v435
          %v590 = vunpack.c.l.b16 %v436
          %v591 = vunpack.c.h.b16 %v436
          %v592 = vunpack.c.l.b16 %v437
          %v593 = vunpack.c.l.b16 %v438
          %v594 = vunpack.c.h.b16 %v438
          %v595 = vunpack.c.l.b16 %v439
          %v596 = vunpack.c.l.b16 %v440
          %v597 = vunpack.c.h.b16 %v440
          %v598 = vunpack.c.l.b16 %v441
          %v599 = vunpack.c.l.b16 %v442
          %v600 = vunpack.c.h.b16 %v442
          %v601 = vunpack.c.l.b16 %v443
          %v602 = vunpack.c.l.b16 %v444
          %v603 = vunpack.c.h.b16 %v444
          %v604 = vunpack.c.l.b16 %v445
          %v605 = vunpack.c.l.b16 %v446
          %v606 = vunpack.c.h.b16 %v446
          %v607 = vunpack.c.l.b16 %v447
          %v608 = vunpack.c.l.b16 %v448
          %v609 = vunpack.c.h.b16 %v448
          %v610 = vunpack.c.l.b16 %v449
          %v611 = vunpack.c.l.b16 %v450
          %v612 = vunpack.c.h.b16 %v450
          %v613 = vunpack.c.l.b16 %v451
          %v614 = vunpack.c.l.b16 %v452
          %v615 = vunpack.c.h.b16 %v452
          %v616 = vunpack.c.l.b16 %v453
          %v617 = vunpack.c.l.b16 %v454
          %v618 = vunpack.c.h.b16 %v454
          %v619 = vunpack.c.l.b16 %v455
          %v620 = vunpack.c.l.b16 %v456
          %v621 = vunpack.c.h.b16 %v456
          %v622 = vunpack.c.l.b16 %v457
          %v623 = vunpack.c.l.b16 %v458
          %v624 = vunpack.c.h.b16 %v458
          %v625 = vunpack.c.l.b16 %v459
          %v626 = vunpack.c.l.b16 %v460
          %v627 = vunpack.c.h.b16 %v460
          %v628 = vunpack.c.l.b16 %v461
          %v629 = vpack.c.b16 %v536, %v533
          %v630 = vpack.c.b16 %v537, %v534
          %v631 = vpack.c.b16 %v538, %v535
          %v632 = vpack.c.b16 %v542, %v539
          %v633 = vpack.c.b16 %v543, %v540
          %v634 = vpack.c.b16 %v544, %v541
          %v635 = vpack.c.b16 %v548, %v545
          %v636 = vpack.c.b16 %v549, %v546
          %v637 = vpack.c.b16 %v550, %v547
          %v638 = vpack.c.b16 %v554, %v551
          %v639 = vpack.c.b16 %v555, %v552
          %v640 = vpack.c.b16 %v556, %v553
          %v641 = vpack.c.b16 %v560, %v557
          %v642 = vpack.c.b16 %v561, %v558
          %v643 = vpack.c.b16 %v562, %v559
          %v644 = vpack.c.b16 %v566, %v563
          %v645 = vpack.c.b16 %v567, %v564
          %v646 = vpack.c.b16 %v568, %v565
          %v647 = vpack.c.b16 %v572, %v569
          %v648 = vpack.c.b16 %v573, %v570
          %v649 = vpack.c.b16 %v574, %v571
          %v650 = vpack.c.b16 %v578, %v575
          %v651 = vpack.c.b16 %v579, %v576
          %v652 = vpack.c.b16 %v580, %v577
          %v653 = vpack.c.b16 %v584, %v581
          %v654 = vpack.c.b16 %v585, %v582
          %v655 = vpack.c.b16 %v586, %v583
          %v656 = vpack.c.b16 %v590, %v587
          %v657 = vpack.c.b16 %v591, %v588
          %v658 = vpack.c.b16 %v592, %v589
          %v659 = vpack.c.b16 %v596, %v593
          %v660 = vpack.c.b16 %v597, %v594
          %v661 = vpack.c.b16 %v598, %v595
          %v662 = vpack.c.b16 %v602, %v599
          %v663 = vpack.c.b16 %v603, %v600
          %v664 = vpack.c.b16 %v604, %v601
          %v665 = vpack.c.b16 %v608, %v605
          %v666 = vpack.c.b16 %v609, %v606
          %v667 = vpack.c.b16 %v610, %v607
          %v668 = vpack.c.b16 %v614, %v611
          %v669 = vpack.c.b16 %v615, %v612
          %v670 = vpack.c.b16 %v616, %v613
          %v671 = vpack.c.b16 %v620, %v617
          %v672 = vpack.c.b16 %v621, %v618
          %v673 = vpack.c.b16 %v622, %v619
          %v674 = vpack.c.b16 %v626, %v623
          %v675 = vpack.c.b16 %v627, %v624
          %v676 = vpack.c.b16 %v628, %v625
          %725 = vmatprep.subr.bf16.mxu0 %v630
          %726 = vmatpush1.bf16.msra.mxu0 %v629
          %727 = vmatprep.subr.bf16.mxu0 %v633
          %728 = vmatpush1.bf16.msra.mxu0 %v632
          %729 = vmatprep.subr.bf16.mxu0 %v636
          %730 = vmatpush1.bf16.msra.mxu0 %v635
          %731 = vmatprep.subr.bf16.mxu0 %v639
          %732 = vmatpush1.bf16.msra.mxu0 %v638
          %733 = vmatprep.subr.bf16.mxu0 %v642
          %734 = vmatpush1.bf16.msra.mxu0 %v641
          %735 = vmatprep.subr.bf16.mxu0 %v645
          %736 = vmatpush1.bf16.msra.mxu0 %v644
          %737 = vmatprep.subr.bf16.mxu0 %v648
          %738 = vmatpush1.bf16.msra.mxu0 %v647
          %739 = vmatprep.subr.bf16.mxu0 %v651
          %740 = vmatpush1.bf16.msra.mxu0 %v650
          %741 = vmatprep.subr.bf16.mxu0 %v654
          %742 = vmatpush1.bf16.msra.mxu0 %v653
          %743 = vmatprep.subr.bf16.mxu0 %v657
          %744 = vmatpush1.bf16.msra.mxu0 %v656
          %745 = vmatprep.subr.bf16.mxu0 %v660
          %746 = vmatpush1.bf16.msra.mxu0 %v659
          %747 = vmatprep.subr.bf16.mxu0 %v663
          %748 = vmatpush1.bf16.msra.mxu0 %v662
          %749 = vmatprep.subr.bf16.mxu0 %v666
          %750 = vmatpush1.bf16.msra.mxu0 %v665
          %751 = vmatprep.subr.bf16.mxu0 %v669
          %752 = vmatpush1.bf16.msra.mxu0 %v668
          %753 = vmatprep.subr.bf16.mxu0 %v672
          %754 = vmatpush1.bf16.msra.mxu0 %v671
          %755 = vmatprep.subr.bf16.mxu0 %v675
          %756 = vmatpush1.bf16.msra.mxu0 %v674
          %757 = vmatprep.mubr.bf16.mxu0 %v466
          %758 = vmatmul.mubr.bf16.gmra.mrb[0].mxu0 %v465
          %v759 = vpop.f32.mrb[0].mxu0
          %v760 = vadd.f32 0.0, %v759
          %v761 = vpop.f32.mrb[0].mxu0
          %v762 = vadd.f32 0.0, %v761
          %v763 = vpop.f32.mrb[0].mxu0
          %v764 = vpop.f32.mrb[0].mxu0
          %765 = vdwg.mxu0
          %766 = vmatprep.subr.bf16.mxu0 0
          %767 = vmatpush1.bf16.msra.mxu0 %v631
          %768 = vmatprep.subr.bf16.mxu0 0
          %769 = vmatpush1.bf16.msra.mxu0 %v634
          %770 = vmatprep.subr.bf16.mxu0 0
          %771 = vmatpush1.bf16.msra.mxu0 %v637
          %772 = vmatprep.subr.bf16.mxu0 0
          %773 = vmatpush1.bf16.msra.mxu0 %v640
          %774 = vmatprep.subr.bf16.mxu0 0
          %775 = vmatpush1.bf16.msra.mxu0 %v643
          %776 = vmatprep.subr.bf16.mxu0 0
          %777 = vmatpush1.bf16.msra.mxu0 %v646
          %778 = vmatprep.subr.bf16.mxu0 0
          %779 = vmatpush1.bf16.msra.mxu0 %v649
          %780 = vmatprep.subr.bf16.mxu0 0
          %781 = vmatpush1.bf16.msra.mxu0 %v652
          %782 = vmatprep.subr.bf16.mxu0 0
          %783 = vmatpush1.bf16.msra.mxu0 %v655
          %784 = vmatprep.subr.bf16.mxu0 0
          %785 = vmatpush1.bf16.msra.mxu0 %v658
          %786 = vmatprep.subr.bf16.mxu0 0
          %787 = vmatpush1.bf16.msra.mxu0 %v661
          %788 = vmatprep.subr.bf16.mxu0 0
          %789 = vmatpush1.bf16.msra.mxu0 %v664
          %790 = vmatprep.subr.bf16.mxu0 0
          %791 = vmatpush1.bf16.msra.mxu0 %v667
          %792 = vmatprep.subr.bf16.mxu0 0
          %793 = vmatpush1.bf16.msra.mxu0 %v670
          %794 = vmatprep.subr.bf16.mxu0 0
          %795 = vmatpush1.bf16.msra.mxu0 %v673
          %796 = vmatprep.subr.bf16.mxu0 0
          %797 = vmatpush1.bf16.msra.mxu0 %v676
          %798 = vmatprep.mubr.bf16.mxu0 %v466
          %799 = vmatmul.mubr.bf16.gmra.mrb[0].mxu0 %v465
          %v800 = vpop.f32.mrb[0].mxu0
          %v801 = vadd.f32 0.0, %v800
          %v802 = vpop.f32.mrb[0].mxu0
          %v803 = vpop.f32.mrb[0].mxu0
          %v804 = vpop.f32.mrb[0].mxu0
          %805 = vdwg.mxu0
          %806 = vst [vmem:[#allocation3] sm:$0xff] %v760
          %807 = vst [vmem:[#allocation3 + $0x8] sm:$0xff] %v762
          %808 = vst [vmem:[#allocation3 + $0x10] sm:$0xff] %v801
        $region52: #{decoder_forward.3} parent=47 // pred_fallthru
          _
        %p809 = scmp.gt.s32.totalorder %s24, 0
        // Predicated region
        $region53: #{decoder_forward.3} parent=47 // pred_check
          %p810 = pneg %p809
        $region54: #{decoder_forward.3} parent=47 // pred_check_branch
          %812 = sbr.rel (%p810) target = $region56
        $region55: #{decoder_forward.3} parent=47 // pred_region
          %v813 = vld [vmem:[#allocation2] sm:$0xff]
          %v814 = vpack.c.bf16 %v813, %v813
          %v815 = vld [vmem:[%s376] sm:$0xff]
          %v816 = vld [vmem:[%s376 + $0x8] sm:$0xf]
          %v817 = vld [vmem:[%s376 + $0xc] sm:$0xff]
          %v818 = vld [vmem:[%s376 + $0x14] sm:$0xf]
          %v819 = vld [vmem:[%s376 + $0x18] sm:$0xff]
          %v820 = vld [vmem:[%s376 + $0x20] sm:$0xf]
          %v821 = vld [vmem:[%s376 + $0x24] sm:$0xff]
          %v822 = vld [vmem:[%s376 + $0x2c] sm:$0xf]
          %v823 = vld [vmem:[%s376 + $0x30] sm:$0xff]
          %v824 = vld [vmem:[%s376 + $0x38] sm:$0xf]
          %v825 = vld [vmem:[%s376 + $0x3c] sm:$0xff]
          %v826 = vld [vmem:[%s376 + $0x44] sm:$0xf]
          %v827 = vld [vmem:[%s376 + $0x48] sm:$0xff]
          %v828 = vld [vmem:[%s376 + $0x50] sm:$0xf]
          %v829 = vld [vmem:[%s376 + $0x54] sm:$0xff]
          %v830 = vld [vmem:[%s376 + $0x5c] sm:$0xf]
          %v831 = vld [vmem:[%s376 + $0x60] sm:$0xff]
          %v832 = vld [vmem:[%s376 + $0x68] sm:$0xf]
          %v833 = vld [vmem:[%s376 + $0x6c] sm:$0xff]
          %v834 = vld [vmem:[%s376 + $0x74] sm:$0xf]
          %v835 = vld [vmem:[%s376 + $0x78] sm:$0xff]
          %v836 = vld [vmem:[%s376 + $0x80] sm:$0xf]
          %v837 = vld [vmem:[%s376 + $0x84] sm:$0xff]
          %v838 = vld [vmem:[%s376 + $0x8c] sm:$0xf]
          %v839 = vld [vmem:[%s376 + $0x90] sm:$0xff]
          %v840 = vld [vmem:[%s376 + $0x98] sm:$0xf]
          %v841 = vld [vmem:[%s376 + $0x9c] sm:$0xff]
          %v842 = vld [vmem:[%s376 + $0xa4] sm:$0xf]
          %v843 = vld [vmem:[%s376 + $0xa8] sm:$0xff]
          %v844 = vld [vmem:[%s376 + $0xb0] sm:$0xf]
          %v845 = vld [vmem:[%s376 + $0xb4] sm:$0xff]
          %v846 = vld [vmem:[%s376 + $0xbc] sm:$0xf]
          %v879 = vunpack.c.l.b16 %v815
          %v880 = vunpack.c.h.b16 %v815
          %v881 = vunpack.c.l.b16 %v816
          %v882 = vunpack.c.l.b16 %v817
          %v883 = vunpack.c.h.b16 %v817
          %v884 = vunpack.c.l.b16 %v818
          %v885 = vunpack.c.l.b16 %v819
          %v886 = vunpack.c.h.b16 %v819
          %v887 = vunpack.c.l.b16 %v820
          %v888 = vunpack.c.l.b16 %v821
          %v889 = vunpack.c.h.b16 %v821
          %v890 = vunpack.c.l.b16 %v822
          %v891 = vunpack.c.l.b16 %v823
          %v892 = vunpack.c.h.b16 %v823
          %v893 = vunpack.c.l.b16 %v824
          %v894 = vunpack.c.l.b16 %v825
          %v895 = vunpack.c.h.b16 %v825
          %v896 = vunpack.c.l.b16 %v826
          %v897 = vunpack.c.l.b16 %v827
          %v898 = vunpack.c.h.b16 %v827
          %v899 = vunpack.c.l.b16 %v828
          %v900 = vunpack.c.l.b16 %v829
          %v901 = vunpack.c.h.b16 %v829
          %v902 = vunpack.c.l.b16 %v830
          %v903 = vunpack.c.l.b16 %v831
          %v904 = vunpack.c.h.b16 %v831
          %v905 = vunpack.c.l.b16 %v832
          %v906 = vunpack.c.l.b16 %v833
          %v907 = vunpack.c.h.b16 %v833
          %v908 = vunpack.c.l.b16 %v834
          %v909 = vunpack.c.l.b16 %v835
          %v910 = vunpack.c.h.b16 %v835
          %v911 = vunpack.c.l.b16 %v836
          %v912 = vunpack.c.l.b16 %v837
          %v913 = vunpack.c.h.b16 %v837
          %v914 = vunpack.c.l.b16 %v838
          %v915 = vunpack.c.l.b16 %v839
          %v916 = vunpack.c.h.b16 %v839
          %v917 = vunpack.c.l.b16 %v840
          %v918 = vunpack.c.l.b16 %v841
          %v919 = vunpack.c.h.b16 %v841
          %v920 = vunpack.c.l.b16 %v842
          %v921 = vunpack.c.l.b16 %v843
          %v922 = vunpack.c.h.b16 %v843
          %v923 = vunpack.c.l.b16 %v844
          %v924 = vunpack.c.l.b16 %v845
          %v925 = vunpack.c.h.b16 %v845
          %v926 = vunpack.c.l.b16 %v846
          %v927 = vpack.c.b16 %v882, %v879
          %v928 = vpack.c.b16 %v883, %v880
          %v929 = vpack.c.b16 %v884, %v881
          %v930 = vpack.c.b16 %v888, %v885
          %v931 = vpack.c.b16 %v889, %v886
          %v932 = vpack.c.b16 %v890, %v887
          %v933 = vpack.c.b16 %v894, %v891
          %v934 = vpack.c.b16 %v895, %v892
          %v935 = vpack.c.b16 %v896, %v893
          %v936 = vpack.c.b16 %v900, %v897
          %v937 = vpack.c.b16 %v901, %v898
          %v938 = vpack.c.b16 %v902, %v899
          %v939 = vpack.c.b16 %v906, %v903
          %v940 = vpack.c.b16 %v907, %v904
          %v941 = vpack.c.b16 %v908, %v905
          %v942 = vpack.c.b16 %v912, %v909
          %v943 = vpack.c.b16 %v913, %v910
          %v944 = vpack.c.b16 %v914, %v911
          %v945 = vpack.c.b16 %v918, %v915
          %v946 = vpack.c.b16 %v919, %v916
          %v947 = vpack.c.b16 %v920, %v917
          %v948 = vpack.c.b16 %v924, %v921
          %v949 = vpack.c.b16 %v925, %v922
          %v950 = vpack.c.b16 %v926, %v923
          %975 = vmatprep.subr.bf16.mxu0 %v928
          %976 = vmatpush1.bf16.msra.mxu0 %v927
          %977 = vmatprep.subr.bf16.mxu0 %v931
          %978 = vmatpush1.bf16.msra.mxu0 %v930
          %979 = vmatprep.subr.bf16.mxu0 %v934
          %980 = vmatpush1.bf16.msra.mxu0 %v933
          %981 = vmatprep.subr.bf16.mxu0 %v937
          %982 = vmatpush1.bf16.msra.mxu0 %v936
          %983 = vmatprep.subr.bf16.mxu0 %v940
          %984 = vmatpush1.bf16.msra.mxu0 %v939
          %985 = vmatprep.subr.bf16.mxu0 %v943
          %986 = vmatpush1.bf16.msra.mxu0 %v942
          %987 = vmatprep.subr.bf16.mxu0 %v946
          %988 = vmatpush1.bf16.msra.mxu0 %v945
          %989 = vmatprep.subr.bf16.mxu0 %v949
          %990 = vmatpush1.bf16.msra.mxu0 %v948
          %991 = vmatprep.subr.bf16.mxu0 0
          %992 = vmatpush1.bf16.msra.mxu0 0
          %993 = vmatprep.subr.bf16.mxu0 0
          %994 = vmatpush1.bf16.msra.mxu0 0
          %995 = vmatprep.subr.bf16.mxu0 0
          %996 = vmatpush1.bf16.msra.mxu0 0
          %997 = vmatprep.subr.bf16.mxu0 0
          %998 = vmatpush1.bf16.msra.mxu0 0
          %999 = vmatprep.subr.bf16.mxu0 0
          %1000 = vmatpush1.bf16.msra.mxu0 0
          %1001 = vmatprep.subr.bf16.mxu0 0
          %1002 = vmatpush1.bf16.msra.mxu0 0
          %1003 = vmatprep.subr.bf16.mxu0 0
          %1004 = vmatpush1.bf16.msra.mxu0 0
          %1005 = vmatprep.subr.bf16.mxu0 0
          %1006 = vmatpush1.bf16.msra.mxu0 0
          %1007 = vmatprep.mubr.bf16.mxu0 0
          %1008 = vmatmul.mubr.bf16.gmra.mrb[0].mxu0 %v814
          %v1009 = vpop.f32.mrb[0].mxu0
          %v1010 = vadd.f32 0.0, %v1009
          %v1011 = vpop.f32.mrb[0].mxu0
          %v1012 = vadd.f32 0.0, %v1011
          %v1013 = vpop.f32.mrb[0].mxu0
          %v1014 = vpop.f32.mrb[0].mxu0
          %1015 = vdwg.mxu0
          %1016 = vmatprep.subr.bf16.mxu0 0
          %1017 = vmatpush1.bf16.msra.mxu0 %v929
          %1018 = vmatprep.subr.bf16.mxu0 0
          %1019 = vmatpush1.bf16.msra.mxu0 %v932
          %1020 = vmatprep.subr.bf16.mxu0 0
          %1021 = vmatpush1.bf16.msra.mxu0 %v935
          %1022 = vmatprep.subr.bf16.mxu0 0
          %1023 = vmatpush1.bf16.msra.mxu0 %v938
          %1024 = vmatprep.subr.bf16.mxu0 0
          %1025 = vmatpush1.bf16.msra.mxu0 %v941
          %1026 = vmatprep.subr.bf16.mxu0 0
          %1027 = vmatpush1.bf16.msra.mxu0 %v944
          %1028 = vmatprep.subr.bf16.mxu0 0
          %1029 = vmatpush1.bf16.msra.mxu0 %v947
          %1030 = vmatprep.subr.bf16.mxu0 0
          %1031 = vmatpush1.bf16.msra.mxu0 %v950
          %1032 = vmatprep.subr.bf16.mxu0 0
          %1033 = vmatpush1.bf16.msra.mxu0 0
          %1034 = vmatprep.subr.bf16.mxu0 0
          %1035 = vmatpush1.bf16.msra.mxu0 0
          %1036 = vmatprep.subr.bf16.mxu0 0
          %1037 = vmatpush1.bf16.msra.mxu0 0
          %1038 = vmatprep.subr.bf16.mxu0 0
          %1039 = vmatpush1.bf16.msra.mxu0 0
          %1040 = vmatprep.subr.bf16.mxu0 0
          %1041 = vmatpush1.bf16.msra.mxu0 0
          %1042 = vmatprep.subr.bf16.mxu0 0
          %1043 = vmatpush1.bf16.msra.mxu0 0
          %1044 = vmatprep.subr.bf16.mxu0 0
          %1045 = vmatpush1.bf16.msra.mxu0 0
          %1046 = vmatprep.subr.bf16.mxu0 0
          %1047 = vmatpush1.bf16.msra.mxu0 0
          %1048 = vmatprep.mubr.bf16.mxu0 0
          %1049 = vmatmul.mubr.bf16.gmra.mrb[0].mxu0 %v814
          %v1050 = vpop.f32.mrb[0].mxu0
          %v1051 = vadd.f32 0.0, %v1050
          %v1052 = vpop.f32.mrb[0].mxu0
          %v1053 = vpop.f32.mrb[0].mxu0
          %v1054 = vpop.f32.mrb[0].mxu0
          %1055 = vdwg.mxu0
          %1056 = vst [vmem:[#allocation3] sm:$0xff] %v1010
          %1057 = vst [vmem:[#allocation3 + $0x8] sm:$0xff] %v1012
          %1058 = vst [vmem:[#allocation3 + $0x10] sm:$0xff] %v1051
        $region56: #{decoder_forward.3} parent=47 // pred_fallthru
          _
        %v1059 = vld [vmem:[%s368] sm:$0xff]
        %v1060 = vld [vmem:[#allocation3] sm:$0xff]
        %v1061 = vld [vmem:[#allocation3 + $0x8] sm:$0xff]
        %v1062 = vld [vmem:[#allocation3 + $0x10] sm:$0xff]
        %v1063 = vld [vmem:[%s388] sm:$0x7]
        %v1065 = vlaneseq
        %v1066 = vshrl.u32 %v1065, 7
        %v1067 = vsub.s32 0, %v1066
        %v1068 = vrot.slane %v1063, %v1067
        %v1069 = vlaneseq
        %v1070 = vshrl.u32 %v1069, 7
        %v1071 = vsub.s32 1, %v1070
        %v1072 = vrot.slane %v1063, %v1071
        %v1073 = vlaneseq
        %v1074 = vshrl.u32 %v1073, 7
        %v1075 = vsub.s32 2, %v1074
        %v1076 = vrot.slane %v1063, %v1075
        %v1080 = vadd.f32 %v1060, %v1068
        %v1081 = vadd.f32 %v1061, %v1072
        %v1082 = vadd.f32 %v1062, %v1076
        %v1083 = vpack.c.bf16 %v1059, %v1059
        %v1084 = vld [vmem:[%s384] sm:$0xff]
        %v1085 = vld [vmem:[%s384 + $0x8] sm:$0xf]
        %v1086 = vld [vmem:[%s384 + $0xc] sm:$0xff]
        %v1087 = vld [vmem:[%s384 + $0x14] sm:$0xf]
        %v1088 = vld [vmem:[%s384 + $0x18] sm:$0xff]
        %v1089 = vld [vmem:[%s384 + $0x20] sm:$0xf]
        %v1090 = vld [vmem:[%s384 + $0x24] sm:$0xff]
        %v1091 = vld [vmem:[%s384 + $0x2c] sm:$0xf]
        %v1092 = vld [vmem:[%s384 + $0x30] sm:$0xff]
        %v1093 = vld [vmem:[%s384 + $0x38] sm:$0xf]
        %v1094 = vld [vmem:[%s384 + $0x3c] sm:$0xff]
        %v1095 = vld [vmem:[%s384 + $0x44] sm:$0xf]
        %v1096 = vld [vmem:[%s384 + $0x48] sm:$0xff]
        %v1097 = vld [vmem:[%s384 + $0x50] sm:$0xf]
        %v1098 = vld [vmem:[%s384 + $0x54] sm:$0xff]
        %v1099 = vld [vmem:[%s384 + $0x5c] sm:$0xf]
        %v1100 = vld [vmem:[%s384 + $0x60] sm:$0xff]
        %v1101 = vld [vmem:[%s384 + $0x68] sm:$0xf]
        %v1102 = vld [vmem:[%s384 + $0x6c] sm:$0xff]
        %v1103 = vld [vmem:[%s384 + $0x74] sm:$0xf]
        %v1104 = vld [vmem:[%s384 + $0x78] sm:$0xff]
        %v1105 = vld [vmem:[%s384 + $0x80] sm:$0xf]
        %v1106 = vld [vmem:[%s384 + $0x84] sm:$0xff]
        %v1107 = vld [vmem:[%s384 + $0x8c] sm:$0xf]
        %v1108 = vld [vmem:[%s384 + $0x90] sm:$0xff]
        %v1109 = vld [vmem:[%s384 + $0x98] sm:$0xf]
        %v1110 = vld [vmem:[%s384 + $0x9c] sm:$0xff]
        %v1111 = vld [vmem:[%s384 + $0xa4] sm:$0xf]
        %v1112 = vld [vmem:[%s384 + $0xa8] sm:$0xff]
        %v1113 = vld [vmem:[%s384 + $0xb0] sm:$0xf]
        %v1114 = vld [vmem:[%s384 + $0xb4] sm:$0xff]
        %v1115 = vld [vmem:[%s384 + $0xbc] sm:$0xf]
        %v1148 = vunpack.c.l.b16 %v1084
        %v1149 = vunpack.c.h.b16 %v1084
        %v1150 = vunpack.c.l.b16 %v1085
        %v1151 = vunpack.c.l.b16 %v1086
        %v1152 = vunpack.c.h.b16 %v1086
        %v1153 = vunpack.c.l.b16 %v1087
        %v1154 = vunpack.c.l.b16 %v1088
        %v1155 = vunpack.c.h.b16 %v1088
        %v1156 = vunpack.c.l.b16 %v1089
        %v1157 = vunpack.c.l.b16 %v1090
        %v1158 = vunpack.c.h.b16 %v1090
        %v1159 = vunpack.c.l.b16 %v1091
        %v1160 = vunpack.c.l.b16 %v1092
        %v1161 = vunpack.c.h.b16 %v1092
        %v1162 = vunpack.c.l.b16 %v1093
        %v1163 = vunpack.c.l.b16 %v1094
        %v1164 = vunpack.c.h.b16 %v1094
        %v1165 = vunpack.c.l.b16 %v1095
        %v1166 = vunpack.c.l.b16 %v1096
        %v1167 = vunpack.c.h.b16 %v1096
        %v1168 = vunpack.c.l.b16 %v1097
        %v1169 = vunpack.c.l.b16 %v1098
        %v1170 = vunpack.c.h.b16 %v1098
        %v1171 = vunpack.c.l.b16 %v1099
        %v1172 = vunpack.c.l.b16 %v1100
        %v1173 = vunpack.c.h.b16 %v1100
        %v1174 = vunpack.c.l.b16 %v1101
        %v1175 = vunpack.c.l.b16 %v1102
        %v1176 = vunpack.c.h.b16 %v1102
        %v1177 = vunpack.c.l.b16 %v1103
        %v1178 = vunpack.c.l.b16 %v1104
        %v1179 = vunpack.c.h.b16 %v1104
        %v1180 = vunpack.c.l.b16 %v1105
        %v1181 = vunpack.c.l.b16 %v1106
        %v1182 = vunpack.c.h.b16 %v1106
        %v1183 = vunpack.c.l.b16 %v1107
        %v1184 = vunpack.c.l.b16 %v1108
        %v1185 = vunpack.c.h.b16 %v1108
        %v1186 = vunpack.c.l.b16 %v1109
        %v1187 = vunpack.c.l.b16 %v1110
        %v1188 = vunpack.c.h.b16 %v1110
        %v1189 = vunpack.c.l.b16 %v1111
        %v1190 = vunpack.c.l.b16 %v1112
        %v1191 = vunpack.c.h.b16 %v1112
        %v1192 = vunpack.c.l.b16 %v1113
        %v1193 = vunpack.c.l.b16 %v1114
        %v1194 = vunpack.c.h.b16 %v1114
        %v1195 = vunpack.c.l.b16 %v1115
        %v1196 = vpack.c.b16 %v1151, %v1148
        %v1197 = vpack.c.b16 %v1152, %v1149
        %v1198 = vpack.c.b16 %v1153, %v1150
        %v1199 = vpack.c.b16 %v1157, %v1154
        %v1200 = vpack.c.b16 %v1158, %v1155
        %v1201 = vpack.c.b16 %v1159, %v1156
        %v1202 = vpack.c.b16 %v1163, %v1160
        %v1203 = vpack.c.b16 %v1164, %v1161
        %v1204 = vpack.c.b16 %v1165, %v1162
        %v1205 = vpack.c.b16 %v1169, %v1166
        %v1206 = vpack.c.b16 %v1170, %v1167
        %v1207 = vpack.c.b16 %v1171, %v1168
        %v1208 = vpack.c.b16 %v1175, %v1172
        %v1209 = vpack.c.b16 %v1176, %v1173
        %v1210 = vpack.c.b16 %v1177, %v1174
        %v1211 = vpack.c.b16 %v1181, %v1178
        %v1212 = vpack.c.b16 %v1182, %v1179
        %v1213 = vpack.c.b16 %v1183, %v1180
        %v1214 = vpack.c.b16 %v1187, %v1184
        %v1215 = vpack.c.b16 %v1188, %v1185
        %v1216 = vpack.c.b16 %v1189, %v1186
        %v1217 = vpack.c.b16 %v1193, %v1190
        %v1218 = vpack.c.b16 %v1194, %v1191
        %v1219 = vpack.c.b16 %v1195, %v1192
        %1244 = vmatprep.subr.bf16.mxu0 %v1197
        %1245 = vmatpush1.bf16.msra.mxu0 %v1196
        %1246 = vmatprep.subr.bf16.mxu0 %v1200
        %1247 = vmatpush1.bf16.msra.mxu0 %v1199
        %1248 = vmatprep.subr.bf16.mxu0 %v1203
        %1249 = vmatpush1.bf16.msra.mxu0 %v1202
        %1250 = vmatprep.subr.bf16.mxu0 %v1206
        %1251 = vmatpush1.bf16.msra.mxu0 %v1205
        %1252 = vmatprep.subr.bf16.mxu0 %v1209
        %1253 = vmatpush1.bf16.msra.mxu0 %v1208
        %1254 = vmatprep.subr.bf16.mxu0 %v1212
        %1255 = vmatpush1.bf16.msra.mxu0 %v1211
        %1256 = vmatprep.subr.bf16.mxu0 %v1215
        %1257 = vmatpush1.bf16.msra.mxu0 %v1214
        %1258 = vmatprep.subr.bf16.mxu0 %v1218
        %1259 = vmatpush1.bf16.msra.mxu0 %v1217
        %1260 = vmatprep.subr.bf16.mxu0 0
        %1261 = vmatpush1.bf16.msra.mxu0 0
        %1262 = vmatprep.subr.bf16.mxu0 0
        %1263 = vmatpush1.bf16.msra.mxu0 0
        %1264 = vmatprep.subr.bf16.mxu0 0
        %1265 = vmatpush1.bf16.msra.mxu0 0
        %1266 = vmatprep.subr.bf16.mxu0 0
        %1267 = vmatpush1.bf16.msra.mxu0 0
        %1268 = vmatprep.subr.bf16.mxu0 0
        %1269 = vmatpush1.bf16.msra.mxu0 0
        %1270 = vmatprep.subr.bf16.mxu0 0
        %1271 = vmatpush1.bf16.msra.mxu0 0
        %1272 = vmatprep.subr.bf16.mxu0 0
        %1273 = vmatpush1.bf16.msra.mxu0 0
        %1274 = vmatprep.subr.bf16.mxu0 0
        %1275 = vmatpush1.bf16.msra.mxu0 0
        %1276 = vmatprep.mubr.bf16.mxu0 0
        %1277 = vmatmul.mubr.bf16.gmra.mrb[0].mxu0 %v1083
        %v1278 = vpop.f32.mrb[0].mxu0
        %v1279 = vadd.f32 0.0, %v1278
        %v1280 = vpop.f32.mrb[0].mxu0
        %v1281 = vadd.f32 0.0, %v1280
        %v1282 = vpop.f32.mrb[0].mxu0
        %v1283 = vpop.f32.mrb[0].mxu0
        %1284 = vdwg.mxu0
        %1285 = vmatprep.subr.bf16.mxu0 0
        %1286 = vmatpush1.bf16.msra.mxu0 %v1198
        %1287 = vmatprep.subr.bf16.mxu0 0
        %1288 = vmatpush1.bf16.msra.mxu0 %v1201
        %1289 = vmatprep.subr.bf16.mxu0 0
        %1290 = vmatpush1.bf16.msra.mxu0 %v1204
        %1291 = vmatprep.subr.bf16.mxu0 0
        %1292 = vmatpush1.bf16.msra.mxu0 %v1207
        %1293 = vmatprep.subr.bf16.mxu0 0
        %1294 = vmatpush1.bf16.msra.mxu0 %v1210
        %1295 = vmatprep.subr.bf16.mxu0 0
        %1296 = vmatpush1.bf16.msra.mxu0 %v1213
        %1297 = vmatprep.subr.bf16.mxu0 0
        %1298 = vmatpush1.bf16.msra.mxu0 %v1216
        %1299 = vmatprep.subr.bf16.mxu0 0
        %1300 = vmatpush1.bf16.msra.mxu0 %v1219
        %1301 = vmatprep.subr.bf16.mxu0 0
        %1302 = vmatpush1.bf16.msra.mxu0 0
        %1303 = vmatprep.subr.bf16.mxu0 0
        %1304 = vmatpush1.bf16.msra.mxu0 0
        %1305 = vmatprep.subr.bf16.mxu0 0
        %1306 = vmatpush1.bf16.msra.mxu0 0
        %1307 = vmatprep.subr.bf16.mxu0 0
        %1308 = vmatpush1.bf16.msra.mxu0 0
        %1309 = vmatprep.subr.bf16.mxu0 0
        %1310 = vmatpush1.bf16.msra.mxu0 0
        %1311 = vmatprep.subr.bf16.mxu0 0
        %1312 = vmatpush1.bf16.msra.mxu0 0
        %1313 = vmatprep.subr.bf16.mxu0 0
        %1314 = vmatpush1.bf16.msra.mxu0 0
        %1315 = vmatprep.subr.bf16.mxu0 0
        %1316 = vmatpush1.bf16.msra.mxu0 0
        %1317 = vmatprep.mubr.bf16.mxu0 0
        %1318 = vmatmul.mubr.bf16.gmra.mrb[0].mxu0 %v1083
        %v1319 = vpop.f32.mrb[0].mxu0
        %v1320 = vadd.f32 0.0, %v1319
        %v1321 = vpop.f32.mrb[0].mxu0
        %v1322 = vpop.f32.mrb[0].mxu0
        %v1323 = vpop.f32.mrb[0].mxu0
        %1324 = vdwg.mxu0
        %v1325 = vadd.f32 %v1080, %v1279
        %v1326 = vxor.u32 %v1325, 2147483648
        %v1327 = vmul.f32 %v1326, 1.442695
        %v1328 = vpow.pop %v1327
        %v1329 = vadd.f32 %v1328, 1.0
        %v1330 = vrcp.pop %v1329
        %v1331 = vmul.f32 1.0, %v1330
        %v1332 = vadd.f32 %v1081, %v1281
        %v1333 = vxor.u32 %v1332, 2147483648
        %v1334 = vmul.f32 %v1333, 1.442695
        %v1335 = vpow.pop %v1334
        %v1336 = vadd.f32 %v1335, 1.0
        %v1337 = vrcp.pop %v1336
        %v1338 = vmul.f32 1.0, %v1337
        %v1339 = vld [vmem:[%s391] sm:$0x1]
        %v1341 = vlaneseq
        %v1342 = vshrl.u32 %v1341, 7
        %v1343 = vsub.s32 0, %v1342
        %v1344 = vrot.slane %v1339, %v1343
        %v1346 = vadd.f32 %v1320, %v1344
        %v1347 = vmul.f32 %v1331, %v1346
        %v1348 = vadd.f32 %v1082, %v1347
        %v1349 = vtanh.pop %v1348
        %v1350 = vsub.f32 1.0, %v1338
        %v1351 = vmul.f32 %v1350, %v1349
        %v1352 = vmul.f32 %v1338, %v1059
        %v1353 = vadd.f32 %v1351, %v1352
        %1354 = vst [vmem:[%s364] sm:$0xff] %v1353
        %1355 = vst [vmem:[#allocation2] sm:$0xff] %v1353
        %p1356 = scmp.eq.s32.totalorder %s24, 1
        // Predicated region
        $region57: #{decoder_forward.3} parent=47 // pred_check
          %p1357 = pneg %p1356
        $region58: #{decoder_forward.3} parent=47 // pred_check_branch
          %1359 = sbr.rel (%p1357) target = $region60
        $region59: #{decoder_forward.3} parent=47 // pred_region
          %1360 = vst [vmem:[#allocation4] sm:$0xff] %v1353
        $region60: #{decoder_forward.3} parent=47 // pred_fallthru
          _
        %s1361 = sand.u32 %s231, 1
        %s1362 = scalar_lea.sflag [#allocation7], %s1361
        %s1363 = sand.u32 %s231, 1
        %s1364 = smul.addr %s1363, 8
        %s1365 = scalar_lea.vmem [#allocation6], %s1364
        // Predicated region
        $region61: #{decoder_forward.3} parent=47 // pred_check
          %p1366 = pneg %p215
        $region62: #{decoder_forward.3} parent=47 // pred_check_branch
          %1368 = sbr.rel (%p1366) target = $region64
        $region63: #{decoder_forward.3} parent=47 // pred_region
          %s1370 = ssub.s32 128, 128
          %1371 = vsyncadd [#allocation5], %s1370
          %s1373 = sshll.u32 [#allocation4], 4
          %s1374 = int_to_ptr.vmem [resolvable:$true] %s1373
          %1376 = dma.vmem_to_hbm [thread:$0]  %s1374, 128, %s7, [#allocation5]
        $region64: #{decoder_forward.3} parent=47 // pred_fallthru
          _
        // Predicated region
        $region65: #{decoder_forward.3} parent=47 // pred_check
          %p1377 = pneg %p241
        $region66: #{decoder_forward.3} parent=47 // pred_check_branch
          %1379 = sbr.rel (%p1377) target = $region68
        $region67: #{decoder_forward.3} parent=47 // pred_region
          %s1381 = ssub.s32 128, 128
          %1382 = vsyncadd %s1362, %s1381
          %s1383 = smul.addr %s24, 128
          %s1384 = scalar_lea.hbm %s8, %s1383
          %s1386 = sshll.u32 %s1365, 4
          %s1387 = int_to_ptr.vmem [resolvable:$true] %s1386
          %1389 = dma.vmem_to_hbm [thread:$0]  %s1387, 128, %s1384, %s1362
        $region68: #{decoder_forward.3} parent=47 // pred_fallthru
          _
        // Predicated region
        $region69: #{decoder_forward.3} parent=47 // pred_check
          %p1390 = pneg %p215
        $region70: #{decoder_forward.3} parent=47 // pred_check_branch
          %1392 = sbr.rel (%p1390) target = $region72
        $region71: #{decoder_forward.3} parent=47 // pred_region
          %1393 = dma.done [#allocation5], 128
        $region72: #{decoder_forward.3} parent=47 // pred_fallthru
          _
      $region48: #{decoder_forward.3} parent=5 // pred_fallthru
        _
      %p1394 = scmp.le.s32.totalorder 2, %s19
      // Predicated region
      $region73: #{decoder_forward.3} parent=5 // pred_check
        %p1395 = pneg %p1394
      $region74: #{decoder_forward.3} parent=5 // pred_check_branch
        %1397 = sbr.rel (%p1395) target = $region76
      $region75: #{decoder_forward.3} parent=5 // pred_region
        %s1398 = ssub.s32 %s19, 2
        // Predicated region
        $region77: #{decoder_forward.3} parent=75 // pred_check
          %p1399 = pneg %p247
        $region78: #{decoder_forward.3} parent=75 // pred_check_branch
          %1401 = sbr.rel (%p1399) target = $region80
        $region79: #{decoder_forward.3} parent=75 // pred_region
          %s1402 = sand.u32 %s232, 1
          %s1403 = scalar_lea.sflag [#allocation7], %s1402
          %s1404 = sand.u32 %s232, 1
          %s1405 = smul.addr %s1404, 8
          %s1406 = scalar_lea.vmem [#allocation6], %s1405
          %1407 = dma.done %s1403, 128
        $region80: #{decoder_forward.3} parent=75 // pred_fallthru
          _
      $region76: #{decoder_forward.3} parent=5 // pred_fallthru
        _
    $region6: #{decoder_forward.3} parent=1 // loop_footer
      %s23 = sadd.s32 1, %s19
    $region7: #{decoder_forward.3} parent=1 // loop_footer_branch
      %18 = sbr.rel target = $region3
    $region8: #{decoder_forward.3} parent=1 // loop_exit
      _
    %1408 = vsyncpa [#allocation5], 1
    %s1409 = scalar_lea.sflag [#allocation5], 1
    %1410 = vsyncpa %s1409, 1
    %1411 = vsyncpa [#allocation7], 1
    %s1412 = scalar_lea.sflag [#allocation7], 1
    %1413 = vsyncpa %s1412, 1

</llo_original>
